<compile_context>
chip_gen: v7x
topology: tpu7x:2x2x1
jax: 0.10.0
libtpu: 0.0.40
codegen_flags: <defaults>
</compile_context>

<pallas_src>
import math
from functools import partial

import jax
import jax.numpy as jnp
from jax.experimental import pallas as pl
from jax.experimental.pallas import tpu as pltpu


def _ffn_kernel(x_ref, w1_ref, b1_ref, w2_ref, b2_ref, o_ref, acc_ref, *,
                approximate):
    k = pl.program_id(1)

    @pl.when(k == 0)
    def _():
        acc_ref[...] = jnp.zeros_like(acc_ref)

    # fc1 slice: (TM, d_model) @ (d_model, tk) on the MXU, f32 accumulate.
    h = jnp.dot(x_ref[...], w1_ref[...], preferred_element_type=jnp.float32)
    h = h + b1_ref[...]

    if approximate:
        # tanh GELU: the transcendental goes to the EUP slot, freeing VALU cycles.
        h = jax.nn.gelu(h, approximate=True)
    else:
        # Exact erf GELU (torch F.gelu default); VPU polynomial.
        h = 0.5 * h * (1.0 + jax.lax.erf(h * (1.0 / math.sqrt(2.0))))

    # fc2 slice: accumulate (TM, tk) @ (tk, d_model) into the resident f32 acc.
    h = h.astype(w2_ref.dtype)
    acc_ref[...] += jnp.dot(h, w2_ref[...], preferred_element_type=jnp.float32)

    @pl.when(k == pl.num_programs(1) - 1)
    def _():
        # Dropout: identity in eval mode.
        o_ref[...] = (acc_ref[...] + b2_ref[...]).astype(o_ref.dtype)


def _round_up(x, m):
    return pl.cdiv(x, m) * m


def _vmem_budget_bytes():
    """~75% of physical VMEM; conservative 64 MiB (v7x per-TC) fallback."""
    cap = None
    try:
        cap = getattr(pltpu.get_tpu_info(), "vmem_capacity_bytes", None)
    except Exception:
        # Hardware query unavailable on this backend/build; fall back to the
        # smallest per-TensorCore VMEM of current generations (safe everywhere).
        cap = None
    if not cap:
        cap = 64 * 1024 * 1024
    return int(cap * 0.75)


def _vmem_estimate(tile_m, tk, d_model, in_isz, out_isz):
    x_buf = 2 * tile_m * d_model * in_isz          # x tile, double-buffered
    o_buf = 2 * tile_m * d_model * out_isz         # out tile, double-buffered
    acc = tile_m * d_model * 4                     # f32 accumulator scratch
    w_buf = 2 * 2 * d_model * tk * in_isz          # W1 + W2 slices, double-buffered
    b_buf = 2 * (tk + d_model) * 4                 # bias slices
    interm = tile_m * tk * (4 + in_isz)            # f32 h + its bf16 cast headroom
    return x_buf + o_buf + acc + w_buf + b_buf + interm


def _pick_tk(d_ff, tk_req):
    """d_ff slice width: multiple of 128 dividing d_ff if possible."""
    tk_req = max(128, (int(tk_req) // 128) * 128)
    if d_ff <= tk_req:
        return d_ff, d_ff                          # single full-width slice
    t = tk_req
    while t >= 128:
        if d_ff % t == 0:
            return t, d_ff                         # exact divisor, no padding
        t -= 128
    # No 128-multiple divisor: zero-pad weights up to a tk multiple (safe:
    # zero columns/rows contribute exactly zero, no garbage/NaN in the chain).
    tk = tk_req
    return tk, _round_up(d_ff, tk)


def position_wise_feed_forward(x, w1, b1, w2, b2, *, tile_m=512, tile_k=512,
                               compute_dtype=jnp.bfloat16, out_dtype=None,
                               gelu_approximate=True):
    """x: [batch, seq, d_model] -> [batch, seq, d_model].

    Weights are stored (in_features, out_features) (already transposed vs
    PyTorch).  compute_dtype=jnp.float32 gives a bit-closer-to-PyTorch path;
    out_dtype=jnp.bfloat16 halves output store bytes.
    """
    batch, seq, d_model = x.shape
    d_ff = w1.shape[1]
    M = batch * seq
    out_dtype = x.dtype if out_dtype is None else out_dtype

    in_isz = jnp.dtype(compute_dtype).itemsize
    out_isz = jnp.dtype(out_dtype).itemsize
    row_align = 16 if in_isz == 2 else 8

    # --- d_ff slice width (k grid axis) ---------------------------------
    tk, d_ff_pad = _pick_tk(d_ff, tile_k)

    # --- M tile: generation-aware budget, >=2 M steps when M allows ------
    budget = _vmem_budget_bytes()
    tile_m_req = max(row_align, (int(tile_m) // row_align) * row_align)
    two_step_cap = max(row_align, _round_up(pl.cdiv(M, 2), row_align))
    tm = min(tile_m_req, two_step_cap)
    while tm > row_align and _vmem_estimate(tm, tk, d_model, in_isz, out_isz) > budget:
        tm = max(row_align, ((tm // 2) // row_align) * row_align)

    # --- operands (no activation padding; weights zero-padded only if the
    # --- d_ff slice width does not divide d_ff) --------------------------
    x2d = x.reshape(M, d_model).astype(compute_dtype)
    w1c = w1.astype(compute_dtype)
    w2c = w2.astype(compute_dtype)
    b1c = b1.reshape(1, d_ff).astype(jnp.float32)
    b2c = b2.reshape(1, d_model).astype(jnp.float32)
    if d_ff_pad != d_ff:
        pad = d_ff_pad - d_ff
        w1c = jnp.pad(w1c, ((0, 0), (0, pad)))
        w2c = jnp.pad(w2c, ((0, pad), (0, 0)))
        b1c = jnp.pad(b1c, ((0, 0), (0, pad)))

    num_m = pl.cdiv(M, tm)
    num_k = d_ff_pad // tk
    grid = (num_m, num_k)

    cost = pl.CostEstimate(
        flops=4 * M * d_model * d_ff,                 # two matmuls
        transcendentals=M * d_ff,                     # one tanh/erf per hidden elem
        bytes_accessed=(M * d_model * (in_isz + out_isz)
                        + num_m * 2 * d_model * d_ff_pad * in_isz
                        + num_m * (d_ff_pad + d_model) * 4),
    )

    kernel = partial(_ffn_kernel, approximate=gelu_approximate)

    out2d = pl.pallas_call(
        kernel,
        out_shape=jax.ShapeDtypeStruct((M, d_model), out_dtype),
        grid_spec=pltpu.PrefetchScalarGridSpec(
            num_scalar_prefetch=0,
            grid=grid,
            in_specs=[
                pl.BlockSpec((tm, d_model), lambda i, k: (i, 0)),    # x tile
                pl.BlockSpec((d_model, tk), lambda i, k: (0, k)),    # W1 slice
                pl.BlockSpec((1, tk), lambda i, k: (0, k)),          # b1 slice
                pl.BlockSpec((tk, d_model), lambda i, k: (k, 0)),    # W2 slice
                pl.BlockSpec((1, d_model), lambda i, k: (0, 0)),     # b2
            ],
            out_specs=pl.BlockSpec((tm, d_model), lambda i, k: (i, 0)),
            scratch_shapes=[pltpu.VMEM((tm, d_model), jnp.float32)],  # fc2 acc
        ),
        compiler_params=pltpu.CompilerParams(
            # M shards across v7x's 2 TCs; d_ff is a reduction -> arbitrary.
            dimension_semantics=("parallel", "arbitrary"),
            vmem_limit_bytes=budget,
        ),
        cost_estimate=cost,
    )(x2d, w1c, b1c, w2c, b2c)

    return out2d.reshape(batch, seq, d_model)


def init_params(key, d_model, d_ff, dtype=jnp.float32):
    """Deterministic init matching nn.Linear's U(-1/sqrt(fan_in), 1/sqrt(fan_in))."""
    k1, k2, k3, k4 = jax.random.split(key, 4)
    bound1 = 1.0 / math.sqrt(d_model)
    bound2 = 1.0 / math.sqrt(d_ff)
    # Stored already transposed relative to PyTorch: (in_features, out_features)
    w1 = jax.random.uniform(k1, (d_model, d_ff), dtype, -bound1, bound1)
    b1 = jax.random.uniform(k2, (d_ff,), dtype, -bound1, bound1)
    w2 = jax.random.uniform(k3, (d_ff, d_model), dtype, -bound2, bound2)
    b2 = jax.random.uniform(k4, (d_model,), dtype, -bound2, bound2)
    return w1, b1, w2, b2


if __name__ == "__main__":
    # Small, lane-dense demo shapes (d_model/d_ff multiples of 128 -> unmasked
    # full-lane stores, fully-used MXU columns).
    batch, seq, d_model, d_ff = 2, 256, 128, 512
    dropout_p = 0.1  # inference mode -> identity

    key = jax.random.PRNGKey(0)
    kx, kp = jax.random.split(key)
    x = jax.random.normal(kx, (batch, seq, d_model), dtype=jnp.float32)
    w1, b1, w2, b2 = init_params(kp, d_model, d_ff)

    out = position_wise_feed_forward(x, w1, b1, w2, b2)
    out = jax.block_until_ready(out)

    # Reference in plain JAX with the same bf16-in / f32-accumulate recipe and
    # the same (tanh-approx) GELU the kernel uses by default.
    bf16 = jnp.bfloat16
    xb = x.reshape(-1, d_model).astype(bf16)
    h_ref = jnp.dot(xb, w1.astype(bf16), preferred_element_type=jnp.float32) + b1
    h_ref = jax.nn.gelu(h_ref, approximate=True)
    ref = jnp.dot(h_ref.astype(bf16), w2.astype(bf16),
                  preferred_element_type=jnp.float32) + b2
    ref = ref.reshape(batch, seq, d_model).astype(x.dtype)

    assert out.shape == (batch, seq, d_model)
    max_err = float(jnp.max(jnp.abs(out - ref)))
    assert jnp.allclose(out, ref, atol=1e-2, rtol=1e-2), f"max_err={max_err}"

    print("KERNEL_OK")
</pallas_src>

<mosaic_0001>
module attributes {stable_mosaic.version = 11 : i64} {
  func.func @_ffn_kernel(%arg0: i32, %arg1: i32, %arg2: memref<256x128xbf16, #tpu.memory_space<vmem>>, %arg3: memref<128x512xbf16, #tpu.memory_space<vmem>>, %arg4: memref<1x512xf32, #tpu.memory_space<vmem>>, %arg5: memref<512x128xbf16, #tpu.memory_space<vmem>>, %arg6: memref<1x128xf32, #tpu.memory_space<vmem>>, %arg7: memref<256x128xf32, #tpu.memory_space<vmem>>, %arg8: memref<256x128xf32, #tpu.memory_space<vmem>>) attributes {dimension_semantics = [#tpu.dimension_semantics<parallel>, #tpu.dimension_semantics<arbitrary>], iteration_bounds = array<i64: 2, 1>, scalar_prefetch = 0 : i64, scratch_operands = 1 : i64, tpu.core_type = #tpu.core_type<tc>, window_params = [{transform_indices = @transform_0, window_bounds = array<i64: 256, 128>}, {transform_indices = @transform_1, window_bounds = array<i64: 128, 512>}, {transform_indices = @transform_2, window_bounds = array<i64: 1, 512>}, {transform_indices = @transform_3, window_bounds = array<i64: 512, 128>}, {pipeline_mode = #tpu.pipeline_mode<synchronous>, transform_indices = @transform_4, window_bounds = array<i64: 1, 128>}, {transform_indices = @transform_5, window_bounds = array<i64: 256, 128>}]} {
    %c0_i32 = arith.constant 0 : i32
    %0 = arith.cmpi eq, %arg1, %c0_i32 : i32
    %1 = arith.extui %0 : i1 to i32
    %c0_i32_0 = arith.constant 0 : i32
    %2 = arith.cmpi ne, %1, %c0_i32_0 : i32
    scf.if %2 {
      %cst_19 = arith.constant 0.000000e+00 : f32
      %31 = vector.broadcast %cst_19 : f32 to vector<256x128xf32>
      %c0_20 = arith.constant 0 : index
      %c0_21 = arith.constant 0 : index
      %32 = vector.load %arg8[%c0_20, %c0_21] : memref<256x128xf32, #tpu.memory_space<vmem>>, vector<256x128xf32>
      tpu.vector_store %arg8[%c0_20, %c0_21], %31 {strides = array<i32>} : memref<256x128xf32, #tpu.memory_space<vmem>>, vector<256x128xf32>,
    } else {
    }
    %c0 = arith.constant 0 : index
    %c0_1 = arith.constant 0 : index
    %3 = vector.load %arg2[%c0, %c0_1] : memref<256x128xbf16, #tpu.memory_space<vmem>>, vector<256x128xbf16>
    %c0_2 = arith.constant 0 : index
    %c0_3 = arith.constant 0 : index
    %4 = vector.load %arg3[%c0_2, %c0_3] : memref<128x512xbf16, #tpu.memory_space<vmem>>, vector<128x512xbf16>
    %cst = arith.constant dense<0.000000e+00> : vector<256x512xf32>
    %5 = tpu.matmul %3, %4, %cst {dimension_numbers = #tpu.dot_dimension_numbers<[1], [0], [0], [1], [0, 0, 1, 1], [], []>} : vector<256x128xbf16>, vector<128x512xbf16>, vector<256x512xf32> -> vector<256x512xf32>
    %c0_4 = arith.constant 0 : index
    %c0_5 = arith.constant 0 : index
    %6 = vector.load %arg4[%c0_4, %c0_5] : memref<1x512xf32, #tpu.memory_space<vmem>>, vector<1x512xf32>
    %7 = vector.broadcast %6 : vector<1x512xf32> to vector<256x512xf32>
    %8 = arith.addf %5, %7 : vector<256x512xf32>
    %9 = arith.mulf %8, %8 : vector<256x512xf32>
    %10 = arith.mulf %8, %9 : vector<256x512xf32>
    %cst_6 = arith.constant 4.471500e-02 : f32
    %11 = vector.broadcast %cst_6 : f32 to vector<256x512xf32>
    %12 = arith.mulf %11, %10 : vector<256x512xf32>
    %13 = arith.addf %8, %12 : vector<256x512xf32>
    %cst_7 = arith.constant 0.797884583 : f32
    %14 = vector.broadcast %cst_7 : f32 to vector<256x512xf32>
    %15 = arith.mulf %14, %13 : vector<256x512xf32>
    %16 = math.tanh %15 : vector<256x512xf32>
    %cst_8 = arith.constant 1.000000e+00 : f32
    %17 = vector.broadcast %cst_8 : f32 to vector<256x512xf32>
    %18 = arith.addf %17, %16 : vector<256x512xf32>
    %cst_9 = arith.constant 5.000000e-01 : f32
    %19 = vector.broadcast %cst_9 : f32 to vector<256x512xf32>
    %20 = arith.mulf %19, %18 : vector<256x512xf32>
    %21 = arith.mulf %8, %20 : vector<256x512xf32>
    %22 = arith.truncf %21 : vector<256x512xf32> to vector<256x512xbf16>
    %c0_10 = arith.constant 0 : index
    %c0_11 = arith.constant 0 : index
    %23 = vector.load %arg8[%c0_10, %c0_11] : memref<256x128xf32, #tpu.memory_space<vmem>>, vector<256x128xf32>
    %c0_12 = arith.constant 0 : index
    %c0_13 = arith.constant 0 : index
    %24 = vector.load %arg5[%c0_12, %c0_13] : memref<512x128xbf16, #tpu.memory_space<vmem>>, vector<512x128xbf16>
    %cst_14 = arith.constant dense<0.000000e+00> : vector<256x128xf32>
    %25 = tpu.matmul %22, %24, %cst_14 {dimension_numbers = #tpu.dot_dimension_numbers<[1], [0], [0], [1], [0, 0, 1, 1], [], []>} : vector<256x512xbf16>, vector<512x128xbf16>, vector<256x128xf32> -> vector<256x128xf32>
    %26 = arith.addf %23, %25 : vector<256x128xf32>
    %c0_15 = arith.constant 0 : index
    %c0_16 = arith.constant 0 : index
    %27 = vector.load %arg8[%c0_15, %c0_16] : memref<256x128xf32, #tpu.memory_space<vmem>>, vector<256x128xf32>
    tpu.vector_store %arg8[%c0_15, %c0_16], %26 {strides = array<i32>} : memref<256x128xf32, #tpu.memory_space<vmem>>, vector<256x128xf32>,
    %c0_i32_17 = arith.constant 0 : i32
    %28 = arith.cmpi eq, %arg1, %c0_i32_17 : i32
    %29 = arith.extui %28 : i1 to i32
    %c0_i32_18 = arith.constant 0 : i32
    %30 = arith.cmpi ne, %29, %c0_i32_18 : i32
    scf.if %30 {
      %c0_19 = arith.constant 0 : index
      %c0_20 = arith.constant 0 : index
      %31 = vector.load %arg8[%c0_19, %c0_20] : memref<256x128xf32, #tpu.memory_space<vmem>>, vector<256x128xf32>
      %c0_21 = arith.constant 0 : index
      %c0_22 = arith.constant 0 : index
      %32 = vector.load %arg6[%c0_21, %c0_22] : memref<1x128xf32, #tpu.memory_space<vmem>>, vector<1x128xf32>
      %33 = vector.broadcast %32 : vector<1x128xf32> to vector<256x128xf32>
      %34 = arith.addf %31, %33 : vector<256x128xf32>
      %c0_23 = arith.constant 0 : index
      %c0_24 = arith.constant 0 : index
      %35 = vector.load %arg7[%c0_23, %c0_24] : memref<256x128xf32, #tpu.memory_space<vmem>>, vector<256x128xf32>
      tpu.vector_store %arg7[%c0_23, %c0_24], %34 {strides = array<i32>} : memref<256x128xf32, #tpu.memory_space<vmem>>, vector<256x128xf32>,
    } else {
    }
    return
  }
  func.func @transform_0(%arg0: i32, %arg1: i32) -> (i32, i32) {
    %c0_i32 = arith.constant 0 : i32
    %c0_i32_0 = arith.constant 0 : i32
    return %arg0, %c0_i32 : i32, i32
  }
  func.func @transform_1(%arg0: i32, %arg1: i32) -> (i32, i32) {
    %c0_i32 = arith.constant 0 : i32
    %c0_i32_0 = arith.constant 0 : i32
    return %c0_i32, %arg1 : i32, i32
  }
  func.func @transform_2(%arg0: i32, %arg1: i32) -> (i32, i32) {
    %c0_i32 = arith.constant 0 : i32
    %c0_i32_0 = arith.constant 0 : i32
    return %c0_i32, %arg1 : i32, i32
  }
  func.func @transform_3(%arg0: i32, %arg1: i32) -> (i32, i32) {
    %c0_i32 = arith.constant 0 : i32
    %c0_i32_0 = arith.constant 0 : i32
    return %arg1, %c0_i32 : i32, i32
  }
  func.func @transform_4(%arg0: i32, %arg1: i32) -> (i32, i32) {
    %c0_i32 = arith.constant 0 : i32
    %c0_i32_0 = arith.constant 0 : i32
    %c0_i32_1 = arith.constant 0 : i32
    return %c0_i32, %c0_i32_0 : i32, i32
  }
  func.func @transform_5(%arg0: i32, %arg1: i32) -> (i32, i32) {
    %c0_i32 = arith.constant 0 : i32
    %c0_i32_0 = arith.constant 0 : i32
    return %arg0, %c0_i32 : i32, i32
  }
}

</mosaic_0001>

<llo_original>
// kernel: tpu_custom_call.1
$region0: #{tpu_custom_call.1}
  #allocation0 [shape = 'u32[]', space=smem, size = 0x4, offset = 0x4, fixed_abs, tag = 'smem constant byte address 0x4 - core index']
  #allocation1 [shape = 'u32[144,128]{1,0:T(1,128)}', space=vmem, size = 0x12000, scoped, tag = 'internal scratch']
  #allocation2 [shape = 'f32[256,128]{1,0:T(8,128)}', space=vmem, size = 0x20000, scoped, tag = 'scratch operand']
  %s0 = inlined_call_operand.hbm [shape: bf16[512,128], index: 0, kind: input, shape index: {}]
  %s1 = inlined_call_operand.hbm [shape: bf16[128,512], index: 1, kind: input, shape index: {}]
  %s2 = inlined_call_operand.vmem [shape: f32[1,512], index: 2, kind: input, shape index: {}]
  %s3 = inlined_call_operand.hbm [shape: bf16[512,128], index: 3, kind: input, shape index: {}]
  %s4 = inlined_call_operand.vmem [shape: f32[1,128], index: 4, kind: input, shape index: {}]
  %s5 = inlined_call_operand.hbm [shape: f32[512,128], index: 5, kind: output, shape index: {}]
  %s6 = sld [smem:[#allocation0]]
  $region73: #{tpu_custom_call.1} parent=0
    _
  %s8 = ssub.s32 1, %s6
  %s9 = scalar_select 0, %s8, %s6
  $region1: #{tpu_custom_call.1} parent=0
    #allocation3 [shape = 'u8[131072]{0}', space=vmem, size = 0x20000, scoped, tag = 'input window, operand 0']
    #allocation4 [shape = 's32[2]{0}', space=sflag, size = 0x8, scoped, tag = 'scoped memory for tpu_custom_call.1']
    #allocation5 [shape = 's32[2]{0}', space=sflag, size = 0x8, scoped, tag = 'scoped memory for tpu_custom_call.1']
    #allocation6 [shape = 'u8[131072]{0}', space=vmem, size = 0x20000, scoped, tag = 'input window, operand 1, single buffered']
    #allocation7 [shape = 's32[1]{0}', space=sflag, size = 0x4, scoped, tag = 'scoped memory for tpu_custom_call.1']
    #allocation8 [shape = 'u8[131072]{0}', space=vmem, size = 0x20000, scoped, tag = 'input window, operand 3, single buffered']
    #allocation9 [shape = 'u8[262144]{0}', space=vmem, size = 0x40000, scoped, tag = 'output window, operand 0']
    %10 = vsyncpa [#allocation4], 0
    %s11 = scalar_lea.sflag [#allocation4], 1
    %12 = vsyncpa %s11, 0
    %13 = vsyncpa [#allocation7], 0
    %14 = vsyncpa [#allocation5], 0
    %s15 = scalar_lea.sflag [#allocation5], 1
    %16 = vsyncpa %s15, 0
    loop: start=0, step=1, limit=4
    $region2: #{tpu_custom_call.1} parent=1 // loop_pre_header
      _
    $region3: #{tpu_custom_call.1} parent=1 // loop_header
      %s18 = sphi 0, %s22
      %p19 = scmp.ge.s32.totalorder %s18, 4
      %s25 = sphi 0, %s37
      %s26 = sphi 0, %s33
      %s27 = sphi 0, %s25
      %s28 = sphi 0, %s26
      %s29 = sphi 0, %s27
      %s30 = sphi 0, %s28
      %s40 = sphi 0, %s42
      %s43 = sphi 0, %s40
      %s44 = sphi 0, %s43
      %s60 = sphi 0, %s44
      %s66 = sphi 0, %s68
      %s69 = sphi 0, %s66
      %s70 = sphi 0, %s69
      %s86 = sphi 0, %s70
      %s92 = sphi 0, %s94
      %s95 = sphi 0, %s92
      %s96 = sphi 0, %s95
      %s112 = sphi 0, %s96
      %s118 = sphi 0, %s120
      %s121 = sphi 0, %s118
      %s122 = sphi 0, %s121
      %s138 = sphi 0, %s122
      %s142 = sphi 0, %s142
      %s144 = sphi 0, %s142
      %s145 = sphi 0, %s144
      %s159 = sphi 0, %s145
      %s165 = sphi 0, %s167
      %s168 = sphi 0, %s165
      %s169 = sphi 0, %s168
      %s185 = sphi 0, %s169
    $region4: #{tpu_custom_call.1} parent=1 // loop_header_branch
      %21 = sbr.rel (%p19) target = $region8
    $region5: #{tpu_custom_call.1} parent=1 // loop_body
      %s23 = ssub.s32 %s18, 1
      %s24 = ssub.s32 %s18, 2
      %s31 = sadd.s32 1, %s26
      %p32 = scmp.ge.s32.totalorder %s31, 1
      %s33 = scalar_select %p32, 0, %s31
      %s34 = sadd.s32 1, %s25
      %s35 = scalar_select %p32, %s34, %s25
      %p36 = scmp.ge.s32.totalorder %s35, 2
      %s37 = scalar_select %p36, 0, %s35
      %s38 = ssub.s32 %s25, %s37
      %p39 = scmp.eq.s32.totalorder %s38, 0
      %s41 = sadd.s32 %s40, 1
      %s42 = scalar_select %p39, %s40, %s41
      %p45 = pneg %p39
      %p46 = scmp.eq.s32.totalorder %s18, 1
      %p47 = por %p45, %p46
      %p48 = scmp.ne.s32.totalorder %s40, %s43
      %p49 = scmp.eq.s32.totalorder %s18, 0
      %p50 = por %p48, %p49
      %p51 = scmp.ne.s32.totalorder %s40, %s43
      %p52 = scmp.eq.s32.totalorder %s23, 1
      %p53 = por %p51, %p52
      %p54 = scmp.ne.s32.totalorder %s43, %s44
      %p55 = scmp.eq.s32.totalorder %s23, 0
      %p56 = por %p54, %p55
      %p57 = scmp.ne.s32.totalorder %s43, %s44
      %p58 = scmp.eq.s32.totalorder %s24, 1
      %p59 = por %p57, %p58
      %p61 = scmp.ne.s32.totalorder %s44, %s60
      %p62 = scmp.eq.s32.totalorder %s24, 0
      %p63 = por %p61, %p62
      %s64 = ssub.s32 %s26, %s33
      %p65 = scmp.eq.s32.totalorder %s64, 0
      %s67 = sadd.s32 %s66, 1
      %s68 = scalar_select %p65, %s66, %s67
      %p71 = pneg %p65
      %p72 = scmp.eq.s32.totalorder %s18, 1
      %p73 = por %p71, %p72
      %p74 = scmp.ne.s32.totalorder %s66, %s69
      %p75 = scmp.eq.s32.totalorder %s18, 0
      %p76 = por %p74, %p75
      %p77 = scmp.ne.s32.totalorder %s66, %s69
      %p78 = scmp.eq.s32.totalorder %s23, 1
      %p79 = por %p77, %p78
      %p80 = scmp.ne.s32.totalorder %s69, %s70
      %p81 = scmp.eq.s32.totalorder %s23, 0
      %p82 = por %p80, %p81
      %p83 = scmp.ne.s32.totalorder %s69, %s70
      %p84 = scmp.eq.s32.totalorder %s24, 1
      %p85 = por %p83, %p84
      %p87 = scmp.ne.s32.totalorder %s70, %s86
      %p88 = scmp.eq.s32.totalorder %s24, 0
      %p89 = por %p87, %p88
      %s90 = ssub.s32 %s26, %s33
      %p91 = scmp.eq.s32.totalorder %s90, 0
      %s93 = sadd.s32 %s92, 1
      %s94 = scalar_select %p91, %s92, %s93
      %p97 = pneg %p91
      %p98 = scmp.eq.s32.totalorder %s18, 1
      %p99 = por %p97, %p98
      %p100 = scmp.ne.s32.totalorder %s92, %s95
      %p101 = scmp.eq.s32.totalorder %s18, 0
      %p102 = por %p100, %p101
      %p103 = scmp.ne.s32.totalorder %s92, %s95
      %p104 = scmp.eq.s32.totalorder %s23, 1
      %p105 = por %p103, %p104
      %p106 = scmp.ne.s32.totalorder %s95, %s96
      %p107 = scmp.eq.s32.totalorder %s23, 0
      %p108 = por %p106, %p107
      %p109 = scmp.ne.s32.totalorder %s95, %s96
      %p110 = scmp.eq.s32.totalorder %s24, 1
      %p111 = por %p109, %p110
      %p113 = scmp.ne.s32.totalorder %s96, %s112
      %p114 = scmp.eq.s32.totalorder %s24, 0
      %p115 = por %p113, %p114
      %s116 = ssub.s32 %s26, %s33
      %p117 = scmp.eq.s32.totalorder %s116, 0
      %s119 = sadd.s32 %s118, 1
      %s120 = scalar_select %p117, %s118, %s119
      %p123 = pneg %p117
      %p124 = scmp.eq.s32.totalorder %s18, 1
      %p125 = por %p123, %p124
      %p126 = scmp.ne.s32.totalorder %s118, %s121
      %p127 = scmp.eq.s32.totalorder %s18, 0
      %p128 = por %p126, %p127
      %p129 = scmp.ne.s32.totalorder %s118, %s121
      %p130 = scmp.eq.s32.totalorder %s23, 1
      %p131 = por %p129, %p130
      %p132 = scmp.ne.s32.totalorder %s121, %s122
      %p133 = scmp.eq.s32.totalorder %s23, 0
      %p134 = por %p132, %p133
      %p135 = scmp.ne.s32.totalorder %s121, %s122
      %p136 = scmp.eq.s32.totalorder %s24, 1
      %p137 = por %p135, %p136
      %p139 = scmp.ne.s32.totalorder %s122, %s138
      %p140 = scmp.eq.s32.totalorder %s24, 0
      %p141 = por %p139, %p140
      %s143 = sadd.s32 %s142, 1
      %p146 = scmp.eq.s32.totalorder %s18, 1
      %p147 = scmp.ne.s32.totalorder %s142, %s144
      %p148 = scmp.eq.s32.totalorder %s18, 0
      %p149 = por %p147, %p148
      %p150 = scmp.ne.s32.totalorder %s142, %s144
      %p151 = scmp.eq.s32.totalorder %s23, 1
      %p152 = por %p150, %p151
      %p153 = scmp.ne.s32.totalorder %s144, %s145
      %p154 = scmp.eq.s32.totalorder %s23, 0
      %p155 = por %p153, %p154
      %p156 = scmp.ne.s32.totalorder %s144, %s145
      %p157 = scmp.eq.s32.totalorder %s24, 1
      %p158 = por %p156, %p157
      %p160 = scmp.ne.s32.totalorder %s145, %s159
      %p161 = scmp.eq.s32.totalorder %s24, 0
      %p162 = por %p160, %p161
      %s163 = ssub.s32 %s25, %s37
      %p164 = scmp.eq.s32.totalorder %s163, 0
      %s166 = sadd.s32 %s165, 1
      %s167 = scalar_select %p164, %s165, %s166
      %p170 = pneg %p164
      %p171 = scmp.eq.s32.totalorder %s18, 1
      %p172 = por %p170, %p171
      %p173 = scmp.ne.s32.totalorder %s165, %s168
      %p174 = scmp.eq.s32.totalorder %s18, 0
      %p175 = por %p173, %p174
      %p176 = scmp.ne.s32.totalorder %s165, %s168
      %p177 = scmp.eq.s32.totalorder %s23, 1
      %p178 = por %p176, %p177
      %p179 = scmp.ne.s32.totalorder %s168, %s169
      %p180 = scmp.eq.s32.totalorder %s23, 0
      %p181 = por %p179, %p180
      %p182 = scmp.ne.s32.totalorder %s168, %s169
      %p183 = scmp.eq.s32.totalorder %s24, 1
      %p184 = por %p182, %p183
      %p186 = scmp.ne.s32.totalorder %s169, %s185
      %p187 = scmp.eq.s32.totalorder %s24, 0
      %p188 = por %p186, %p187
      %p189 = scmp.le.s32.totalorder 1, %s18
      %p190 = scmp.lt.s32.totalorder %s18, 3
      %p191 = pnand %p189, %p190
      %p192 = pneg %p191
      // Predicated region
      $region9: #{tpu_custom_call.1} parent=5 // pred_check
        _
      $region10: #{tpu_custom_call.1} parent=5 // pred_check_branch
        %194 = sbr.rel (%p191) target = $region12
      $region11: #{tpu_custom_call.1} parent=5 // pred_region
        %s195 = ssub.s32 %s18, 1
        // Predicated region
        $region13: #{tpu_custom_call.1} parent=11 // pred_check
          %p196 = pneg %p82
        $region14: #{tpu_custom_call.1} parent=11 // pred_check_branch
          %198 = sbr.rel (%p196) target = $region16
        $region15: #{tpu_custom_call.1} parent=11 // pred_region
          %s199 = smul.u32 4, %s28
          %s201 = ssub.s32 4096, 4096
          %202 = vsyncadd [#allocation7], %s201
          %s203 = smul.addr %s199, 64
          %s204 = scalar_lea.hbm %s1, %s203
          %s205 = sshll.u32 [#allocation6], 4
          %s206 = int_to_ptr.vmem [resolvable:$true] %s205
          %211 = dma.hbm_to_vmem [thread:$0]  %s204, 4096, %s206, [#allocation7], 256, 256, 16
        $region16: #{tpu_custom_call.1} parent=11 // pred_fallthru
          _
        // Predicated region
        $region17: #{tpu_custom_call.1} parent=11 // pred_check
          %p212 = pneg %p108
        $region18: #{tpu_custom_call.1} parent=11 // pred_check_branch
          %214 = sbr.rel (%p212) target = $region20
        $region19: #{tpu_custom_call.1} parent=11 // pred_region
          %s215 = smul.u32 4, %s28
          %p216 = scmp.lt.s32.totalorder %s215, 3
          %s217 = scalar_select %p216, %s215, 3
          %s218 = scalar_lea.vmem %s2, %s217
          %s219 = smul.u32 4, %s28
        $region20: #{tpu_custom_call.1} parent=11 // pred_fallthru
          _
        // Predicated region
        $region21: #{tpu_custom_call.1} parent=11 // pred_check
          %p220 = pneg %p134
        $region22: #{tpu_custom_call.1} parent=11 // pred_check_branch
          %222 = sbr.rel (%p220) target = $region24
        $region23: #{tpu_custom_call.1} parent=11 // pred_region
          %s223 = smul.u32 64, %s28
          %s225 = ssub.s32 4096, 4096
          %226 = vsyncadd [#allocation7], %s225
          %s227 = smul.addr %s223, 64
          %s228 = scalar_lea.hbm %s3, %s227
          %s229 = sshll.u32 [#allocation8], 4
          %s230 = int_to_ptr.vmem [resolvable:$true] %s229
          %235 = dma.hbm_to_vmem [thread:$0]  %s228, 4096, %s230, [#allocation7], 64, 64, 4
        $region24: #{tpu_custom_call.1} parent=11 // pred_fallthru
          _
        // Predicated region
        $region25: #{tpu_custom_call.1} parent=11 // pred_check
          %p236 = pneg %p155
        $region26: #{tpu_custom_call.1} parent=11 // pred_check_branch
          %238 = sbr.rel (%p236) target = $region28
        $region27: #{tpu_custom_call.1} parent=11 // pred_region
          _
        $region28: #{tpu_custom_call.1} parent=11 // pred_fallthru
          _
      $region12: #{tpu_custom_call.1} parent=5 // pred_fallthru
        _
      %p239 = scmp.lt.s32.totalorder %s18, 2
      // Predicated region
      $region29: #{tpu_custom_call.1} parent=5 // pred_check
        %p240 = pneg %p239
      $region30: #{tpu_custom_call.1} parent=5 // pred_check_branch
        %242 = sbr.rel (%p240) target = $region32
      $region31: #{tpu_custom_call.1} parent=5 // pred_region
        // Predicated region
        $region33: #{tpu_custom_call.1} parent=31 // pred_check
          %p243 = pneg %p50
        $region34: #{tpu_custom_call.1} parent=31 // pred_check_branch
          %245 = sbr.rel (%p243) target = $region36
        $region35: #{tpu_custom_call.1} parent=31 // pred_region
          %s246 = sand.u32 %s40, 1
          %s247 = scalar_lea.sflag [#allocation4], %s246
          %s248 = sand.u32 %s40, 1
          %s249 = smul.addr %s248, 128
          %s250 = scalar_lea.vmem [#allocation3], %s249
          %s251 = smul.u32 32, %s25
          %s253 = ssub.s32 2048, 2048
          %254 = vsyncadd %s247, %s253
          %s255 = smul.addr %s251, 64
          %s256 = scalar_lea.hbm %s0, %s255
          %s257 = sshll.u32 %s250, 4
          %s258 = int_to_ptr.vmem [resolvable:$true] %s257
          %263 = dma.hbm_to_vmem [thread:$0]  %s256, 2048, %s258, %s247, 64, 64, 4
        $region36: #{tpu_custom_call.1} parent=31 // pred_fallthru
          _
      $region32: #{tpu_custom_call.1} parent=5 // pred_fallthru
        _
      %p264 = scmp.le.s32.totalorder 1, %s18
      %p265 = scmp.lt.s32.totalorder %s18, 3
      %p266 = pnand %p264, %p265
      %p267 = pneg %p266
      // Predicated region
      $region37: #{tpu_custom_call.1} parent=5 // pred_check
        _
      $region38: #{tpu_custom_call.1} parent=5 // pred_check_branch
        %269 = sbr.rel (%p266) target = $region40
      $region39: #{tpu_custom_call.1} parent=5 // pred_region
        %s270 = ssub.s32 %s18, 1
        %s271 = sand.u32 %s43, 1
        %s272 = scalar_lea.sflag [#allocation4], %s271
        %s273 = sand.u32 %s43, 1
        %s274 = smul.addr %s273, 128
        %s275 = scalar_lea.vmem [#allocation3], %s274
        // Predicated region
        $region41: #{tpu_custom_call.1} parent=39 // pred_check
          %p276 = pneg %p56
        $region42: #{tpu_custom_call.1} parent=39 // pred_check_branch
          %278 = sbr.rel (%p276) target = $region44
        $region43: #{tpu_custom_call.1} parent=39 // pred_region
          %279 = dma.done %s272, 2048
        $region44: #{tpu_custom_call.1} parent=39 // pred_fallthru
          _
        // Predicated region
        $region45: #{tpu_custom_call.1} parent=39 // pred_check
          %p280 = pneg %p82
        $region46: #{tpu_custom_call.1} parent=39 // pred_check_branch
          %282 = sbr.rel (%p280) target = $region48
        $region47: #{tpu_custom_call.1} parent=39 // pred_region
          %283 = dma.done [#allocation7], 4096
        $region48: #{tpu_custom_call.1} parent=39 // pred_fallthru
          _
        // Predicated region
        $region49: #{tpu_custom_call.1} parent=39 // pred_check
          %p284 = pneg %p134
        $region50: #{tpu_custom_call.1} parent=39 // pred_check_branch
          %286 = sbr.rel (%p284) target = $region52
        $region51: #{tpu_custom_call.1} parent=39 // pred_region
          %287 = dma.done [#allocation7], 4096
        $region52: #{tpu_custom_call.1} parent=39 // pred_fallthru
          _
        %s288 = sand.u32 %s43, 1
        %s289 = scalar_lea.sflag [#allocation4], %s288
        %s290 = sand.u32 %s43, 1
        %s291 = smul.addr %s290, 128
        %s292 = scalar_lea.vmem [#allocation3], %s291
        %p293 = pneg %p56
        %p294 = pneg %p53
        %p295 = pneg %p82
        %p296 = pneg %p79
        %s297 = smul.u32 4, %s28
        %p298 = scmp.lt.s32.totalorder %s297, 3
        %s299 = scalar_select %p298, %s297, 3
        %s300 = scalar_lea.vmem %s2, %s299
        %p301 = pneg %p108
        %p302 = pneg %p105
        %p303 = pneg %p134
        %p304 = pneg %p131
        %p305 = pneg %p155
        %p306 = pneg %p152
        %p307 = pneg %p181
        %p308 = pneg %p178
        %s309 = sand.u32 %s168, 1
        %s310 = scalar_lea.sflag [#allocation5], %s309
        %s311 = sand.u32 %s168, 1
        %s312 = smul.addr %s311, 256
        %s313 = scalar_lea.vmem [#allocation9], %s312
        %s314 = smul.u32 32, %s27
        %s315 = smul.u32 4, %s28
        %s316 = smul.u32 4, %s28
        %p317 = scmp.lt.s32.totalorder %s316, 3
        %s318 = scalar_select %p317, %s316, 3
        %s319 = scalar_lea.vmem %s2, %s318
        %s320 = smul.u32 4, %s28
        %s321 = smul.u32 64, %s28
        %s322 = smul.u32 32, %s27
        %p324 = scmp.eq.s32.totalorder %s28, 0
        // Predicated region
        $region53: #{tpu_custom_call.1} parent=39 // pred_check
          %p325 = pneg %p324
        $region54: #{tpu_custom_call.1} parent=39 // pred_check_branch
          %327 = sbr.rel (%p325) target = $region56
        $region55: #{tpu_custom_call.1} parent=39 // pred_region
          %328 = vst [vmem:[#allocation2] sm:$0xff] 0.0
          %329 = vst [vmem:[#allocation2 + $0x8] sm:$0xff] 0.0
          %330 = vst [vmem:[#allocation2 + $0x10] sm:$0xff] 0.0
          %331 = vst [vmem:[#allocation2 + $0x18] sm:$0xff] 0.0
          %332 = vst [vmem:[#allocation2 + $0x20] sm:$0xff] 0.0
          %333 = vst [vmem:[#allocation2 + $0x28] sm:$0xff] 0.0
          %334 = vst [vmem:[#allocation2 + $0x30] sm:$0xff] 0.0
          %335 = vst [vmem:[#allocation2 + $0x38] sm:$0xff] 0.0
          %336 = vst [vmem:[#allocation2 + $0x40] sm:$0xff] 0.0
          %337 = vst [vmem:[#allocation2 + $0x48] sm:$0xff] 0.0
          %338 = vst [vmem:[#allocation2 + $0x50] sm:$0xff] 0.0
          %339 = vst [vmem:[#allocation2 + $0x58] sm:$0xff] 0.0
          %340 = vst [vmem:[#allocation2 + $0x60] sm:$0xff] 0.0
          %341 = vst [vmem:[#allocation2 + $0x68] sm:$0xff] 0.0
          %342 = vst [vmem:[#allocation2 + $0x70] sm:$0xff] 0.0
          %343 = vst [vmem:[#allocation2 + $0x78] sm:$0xff] 0.0
          %344 = vst [vmem:[#allocation2 + $0x80] sm:$0xff] 0.0
          %345 = vst [vmem:[#allocation2 + $0x88] sm:$0xff] 0.0
          %346 = vst [vmem:[#allocation2 + $0x90] sm:$0xff] 0.0
          %347 = vst [vmem:[#allocation2 + $0x98] sm:$0xff] 0.0
          %348 = vst [vmem:[#allocation2 + $0xa0] sm:$0xff] 0.0
          %349 = vst [vmem:[#allocation2 + $0xa8] sm:$0xff] 0.0
          %350 = vst [vmem:[#allocation2 + $0xb0] sm:$0xff] 0.0
          %351 = vst [vmem:[#allocation2 + $0xb8] sm:$0xff] 0.0
          %352 = vst [vmem:[#allocation2 + $0xc0] sm:$0xff] 0.0
          %353 = vst [vmem:[#allocation2 + $0xc8] sm:$0xff] 0.0
          %354 = vst [vmem:[#allocation2 + $0xd0] sm:$0xff] 0.0
          %355 = vst [vmem:[#allocation2 + $0xd8] sm:$0xff] 0.0
          %356 = vst [vmem:[#allocation2 + $0xe0] sm:$0xff] 0.0
          %357 = vst [vmem:[#allocation2 + $0xe8] sm:$0xff] 0.0
          %358 = vst [vmem:[#allocation2 + $0xf0] sm:$0xff] 0.0
          %359 = vst [vmem:[#allocation2 + $0xf8] sm:$0xff] 0.0
        $region56: #{tpu_custom_call.1} parent=39 // pred_fallthru
          _
        %v360 = vld [vmem:[%s275] sm:$0xf]
        %v361 = vld [vmem:[%s275 + $0x4] sm:$0xf]
        %v362 = vld [vmem:[%s275 + $0x8] sm:$0xf]
        %v363 = vld [vmem:[%s275 + $0xc] sm:$0xf]
        %v364 = vld [vmem:[%s275 + $0x10] sm:$0xf]
        %v365 = vld [vmem:[%s275 + $0x14] sm:$0xf]
        %v366 = vld [vmem:[%s275 + $0x18] sm:$0xf]
        %v367 = vld [vmem:[%s275 + $0x1c] sm:$0xf]
        %v368 = vld [vmem:[%s275 + $0x20] sm:$0xf]
        %v369 = vld [vmem:[%s275 + $0x24] sm:$0xf]
        %v370 = vld [vmem:[%s275 + $0x28] sm:$0xf]
        %v371 = vld [vmem:[%s275 + $0x2c] sm:$0xf]
        %v372 = vld [vmem:[%s275 + $0x30] sm:$0xf]
        %v373 = vld [vmem:[%s275 + $0x34] sm:$0xf]
        %v374 = vld [vmem:[%s275 + $0x38] sm:$0xf]
        %v375 = vld [vmem:[%s275 + $0x3c] sm:$0xf]
        %v376 = vld [vmem:[%s275 + $0x40] sm:$0xf]
        %v377 = vld [vmem:[%s275 + $0x44] sm:$0xf]
        %v378 = vld [vmem:[%s275 + $0x48] sm:$0xf]
        %v379 = vld [vmem:[%s275 + $0x4c] sm:$0xf]
        %v380 = vld [vmem:[%s275 + $0x50] sm:$0xf]
        %v381 = vld [vmem:[%s275 + $0x54] sm:$0xf]
        %v382 = vld [vmem:[%s275 + $0x58] sm:$0xf]
        %v383 = vld [vmem:[%s275 + $0x5c] sm:$0xf]
        %v384 = vld [vmem:[%s275 + $0x60] sm:$0xf]
        %v385 = vld [vmem:[%s275 + $0x64] sm:$0xf]
        %v386 = vld [vmem:[%s275 + $0x68] sm:$0xf]
        %v387 = vld [vmem:[%s275 + $0x6c] sm:$0xf]
        %v388 = vld [vmem:[%s275 + $0x70] sm:$0xf]
        %v389 = vld [vmem:[%s275 + $0x74] sm:$0xf]
        %v390 = vld [vmem:[%s275 + $0x78] sm:$0xf]
        %v391 = vld [vmem:[%s275 + $0x7c] sm:$0xf]
        %v392 = vld [vmem:[#allocation6] sm:$0xff]
        %v393 = vld [vmem:[#allocation6 + $0x8] sm:$0xff]
        %v394 = vld [vmem:[#allocation6 + $0x10] sm:$0xff]
        %v395 = vld [vmem:[#allocation6 + $0x18] sm:$0xff]
        %v396 = vld [vmem:[#allocation6 + $0x20] sm:$0xff]
        %v397 = vld [vmem:[#allocation6 + $0x28] sm:$0xff]
        %v398 = vld [vmem:[#allocation6 + $0x30] sm:$0xff]
        %v399 = vld [vmem:[#allocation6 + $0x38] sm:$0xff]
        %v400 = vld [vmem:[#allocation6 + $0x40] sm:$0xff]
        %v401 = vld [vmem:[#allocation6 + $0x48] sm:$0xff]
        %v402 = vld [vmem:[#allocation6 + $0x50] sm:$0xff]
        %v403 = vld [vmem:[#allocation6 + $0x58] sm:$0xff]
        %v404 = vld [vmem:[#allocation6 + $0x60] sm:$0xff]
        %v405 = vld [vmem:[#allocation6 + $0x68] sm:$0xff]
        %v406 = vld [vmem:[#allocation6 + $0x70] sm:$0xff]
        %v407 = vld [vmem:[#allocation6 + $0x78] sm:$0xff]
        %v408 = vld [vmem:[#allocation6 + $0x80] sm:$0xff]
        %v409 = vld [vmem:[#allocation6 + $0x88] sm:$0xff]
        %v410 = vld [vmem:[#allocation6 + $0x90] sm:$0xff]
        %v411 = vld [vmem:[#allocation6 + $0x98] sm:$0xff]
        %v412 = vld [vmem:[#allocation6 + $0xa0] sm:$0xff]
        %v413 = vld [vmem:[#allocation6 + $0xa8] sm:$0xff]
        %v414 = vld [vmem:[#allocation6 + $0xb0] sm:$0xff]
        %v415 = vld [vmem:[#allocation6 + $0xb8] sm:$0xff]
        %v416 = vld [vmem:[#allocation6 + $0xc0] sm:$0xff]
        %v417 = vld [vmem:[#allocation6 + $0xc8] sm:$0xff]
        %v418 = vld [vmem:[#allocation6 + $0xd0] sm:$0xff]
        %v419 = vld [vmem:[#allocation6 + $0xd8] sm:$0xff]
        %v420 = vld [vmem:[#allocation6 + $0xe0] sm:$0xff]
        %v421 = vld [vmem:[#allocation6 + $0xe8] sm:$0xff]
        %v422 = vld [vmem:[#allocation6 + $0xf0] sm:$0xff]
        %v423 = vld [vmem:[#allocation6 + $0xf8] sm:$0xff]
        %v424 = vld [vmem:[%s319] sm:$0xf]
        %v426 = vlaneseq
        %v427 = vshrl.u32 %v426, 7
        %v428 = vsub.s32 0, %v427
        %v429 = vrot.slane %v424, %v428
        %v430 = vlaneseq
        %v431 = vshrl.u32 %v430, 7
        %v432 = vsub.s32 1, %v431
        %v433 = vrot.slane %v424, %v432
        %v434 = vlaneseq
        %v435 = vshrl.u32 %v434, 7
        %v436 = vsub.s32 2, %v435
        %v437 = vrot.slane %v424, %v436
        %v438 = vlaneseq
        %v439 = vshrl.u32 %v438, 7
        %v440 = vsub.s32 3, %v439
        %v441 = vrot.slane %v424, %v440
        %v478 = vunpack.c.l.b16 %v360
        %v479 = vunpack.c.l.b16 %v361
        %v480 = vunpack.c.l.b16 %v362
        %v481 = vunpack.c.l.b16 %v363
        %v482 = vunpack.c.l.b16 %v364
        %v483 = vunpack.c.l.b16 %v365
        %v484 = vunpack.c.l.b16 %v366
        %v485 = vunpack.c.l.b16 %v367
        %v486 = vunpack.c.l.b16 %v368
        %v487 = vunpack.c.l.b16 %v369
        %v488 = vunpack.c.l.b16 %v370
        %v489 = vunpack.c.l.b16 %v371
        %v490 = vunpack.c.l.b16 %v372
        %v491 = vunpack.c.l.b16 %v373
        %v492 = vunpack.c.l.b16 %v374
        %v493 = vunpack.c.l.b16 %v375
        %v494 = vunpack.c.l.b16 %v376
        %v495 = vunpack.c.l.b16 %v377
        %v496 = vunpack.c.l.b16 %v378
        %v497 = vunpack.c.l.b16 %v379
        %v498 = vunpack.c.l.b16 %v380
        %v499 = vunpack.c.l.b16 %v381
        %v500 = vunpack.c.l.b16 %v382
        %v501 = vunpack.c.l.b16 %v383
        %v502 = vunpack.c.l.b16 %v384
        %v503 = vunpack.c.l.b16 %v385
        %v504 = vunpack.c.l.b16 %v386
        %v505 = vunpack.c.l.b16 %v387
        %v506 = vunpack.c.l.b16 %v388
        %v507 = vunpack.c.l.b16 %v389
        %v508 = vunpack.c.l.b16 %v390
        %v509 = vunpack.c.l.b16 %v391
        %v510 = vpack.c.b16 %v479, %v478
        %v511 = vpack.c.b16 %v481, %v480
        %v512 = vpack.c.b16 %v483, %v482
        %v513 = vpack.c.b16 %v485, %v484
        %v514 = vpack.c.b16 %v487, %v486
        %v515 = vpack.c.b16 %v489, %v488
        %v516 = vpack.c.b16 %v491, %v490
        %v517 = vpack.c.b16 %v493, %v492
        %v518 = vpack.c.b16 %v495, %v494
        %v519 = vpack.c.b16 %v497, %v496
        %v520 = vpack.c.b16 %v499, %v498
        %v521 = vpack.c.b16 %v501, %v500
        %v522 = vpack.c.b16 %v503, %v502
        %v523 = vpack.c.b16 %v505, %v504
        %v524 = vpack.c.b16 %v507, %v506
        %v525 = vpack.c.b16 %v509, %v508
        %v574 = vunpack.c.l.b16 %v392
        %v575 = vunpack.c.h.b16 %v392
        %v576 = vunpack.c.l.b16 %v393
        %v577 = vunpack.c.h.b16 %v393
        %v578 = vunpack.c.l.b16 %v394
        %v579 = vunpack.c.h.b16 %v394
        %v580 = vunpack.c.l.b16 %v395
        %v581 = vunpack.c.h.b16 %v395
        %v582 = vunpack.c.l.b16 %v396
        %v583 = vunpack.c.h.b16 %v396
        %v584 = vunpack.c.l.b16 %v397
        %v585 = vunpack.c.h.b16 %v397
        %v586 = vunpack.c.l.b16 %v398
        %v587 = vunpack.c.h.b16 %v398
        %v588 = vunpack.c.l.b16 %v399
        %v589 = vunpack.c.h.b16 %v399
        %v590 = vunpack.c.l.b16 %v400
        %v591 = vunpack.c.h.b16 %v400
        %v592 = vunpack.c.l.b16 %v401
        %v593 = vunpack.c.h.b16 %v401
        %v594 = vunpack.c.l.b16 %v402
        %v595 = vunpack.c.h.b16 %v402
        %v596 = vunpack.c.l.b16 %v403
        %v597 = vunpack.c.h.b16 %v403
        %v598 = vunpack.c.l.b16 %v404
        %v599 = vunpack.c.h.b16 %v404
        %v600 = vunpack.c.l.b16 %v405
        %v601 = vunpack.c.h.b16 %v405
        %v602 = vunpack.c.l.b16 %v406
        %v603 = vunpack.c.h.b16 %v406
        %v604 = vunpack.c.l.b16 %v407
        %v605 = vunpack.c.h.b16 %v407
        %v606 = vunpack.c.l.b16 %v408
        %v607 = vunpack.c.h.b16 %v408
        %v608 = vunpack.c.l.b16 %v409
        %v609 = vunpack.c.h.b16 %v409
        %v610 = vunpack.c.l.b16 %v410
        %v611 = vunpack.c.h.b16 %v410
        %v612 = vunpack.c.l.b16 %v411
        %v613 = vunpack.c.h.b16 %v411
        %v614 = vunpack.c.l.b16 %v412
        %v615 = vunpack.c.h.b16 %v412
        %v616 = vunpack.c.l.b16 %v413
        %v617 = vunpack.c.h.b16 %v413
        %v618 = vunpack.c.l.b16 %v414
        %v619 = vunpack.c.h.b16 %v414
        %v620 = vunpack.c.l.b16 %v415
        %v621 = vunpack.c.h.b16 %v415
        %v622 = vunpack.c.l.b16 %v416
        %v623 = vunpack.c.h.b16 %v416
        %v624 = vunpack.c.l.b16 %v417
        %v625 = vunpack.c.h.b16 %v417
        %v626 = vunpack.c.l.b16 %v418
        %v627 = vunpack.c.h.b16 %v418
        %v628 = vunpack.c.l.b16 %v419
        %v629 = vunpack.c.h.b16 %v419
        %v630 = vunpack.c.l.b16 %v420
        %v631 = vunpack.c.h.b16 %v420
        %v632 = vunpack.c.l.b16 %v421
        %v633 = vunpack.c.h.b16 %v421
        %v634 = vunpack.c.l.b16 %v422
        %v635 = vunpack.c.h.b16 %v422
        %v636 = vunpack.c.l.b16 %v423
        %v637 = vunpack.c.h.b16 %v423
        %v638 = vpack.c.b16 %v578, %v574
        %v639 = vpack.c.b16 %v579, %v575
        %v640 = vpack.c.b16 %v580, %v576
        %v641 = vpack.c.b16 %v581, %v577
        %v642 = vpack.c.b16 %v586, %v582
        %v643 = vpack.c.b16 %v587, %v583
        %v644 = vpack.c.b16 %v588, %v584
        %v645 = vpack.c.b16 %v589, %v585
        %v646 = vpack.c.b16 %v594, %v590
        %v647 = vpack.c.b16 %v595, %v591
        %v648 = vpack.c.b16 %v596, %v592
        %v649 = vpack.c.b16 %v597, %v593
        %v650 = vpack.c.b16 %v602, %v598
        %v651 = vpack.c.b16 %v603, %v599
        %v652 = vpack.c.b16 %v604, %v600
        %v653 = vpack.c.b16 %v605, %v601
        %v654 = vpack.c.b16 %v610, %v606
        %v655 = vpack.c.b16 %v611, %v607
        %v656 = vpack.c.b16 %v612, %v608
        %v657 = vpack.c.b16 %v613, %v609
        %v658 = vpack.c.b16 %v618, %v614
        %v659 = vpack.c.b16 %v619, %v615
        %v660 = vpack.c.b16 %v620, %v616
        %v661 = vpack.c.b16 %v621, %v617
        %v662 = vpack.c.b16 %v626, %v622
        %v663 = vpack.c.b16 %v627, %v623
        %v664 = vpack.c.b16 %v628, %v624
        %v665 = vpack.c.b16 %v629, %v625
        %v666 = vpack.c.b16 %v634, %v630
        %v667 = vpack.c.b16 %v635, %v631
        %v668 = vpack.c.b16 %v636, %v632
        %v669 = vpack.c.b16 %v637, %v633
        %702 = vmatprep.subr.bf16.mxu0 %v639
        %703 = vmatpush1.bf16.msra.mxu0 %v638
        %704 = vmatprep.subr.bf16.mxu0 %v643
        %705 = vmatpush1.bf16.msra.mxu0 %v642
        %706 = vmatprep.subr.bf16.mxu0 %v647
        %707 = vmatpush1.bf16.msra.mxu0 %v646
        %708 = vmatprep.subr.bf16.mxu0 %v651
        %709 = vmatpush1.bf16.msra.mxu0 %v650
        %710 = vmatprep.subr.bf16.mxu0 %v655
        %711 = vmatpush1.bf16.msra.mxu0 %v654
        %712 = vmatprep.subr.bf16.mxu0 %v659
        %713 = vmatpush1.bf16.msra.mxu0 %v658
        %714 = vmatprep.subr.bf16.mxu0 %v663
        %715 = vmatpush1.bf16.msra.mxu0 %v662
        %716 = vmatprep.subr.bf16.mxu0 %v667
        %717 = vmatpush1.bf16.msra.mxu0 %v666
        %718 = vmatprep.subr.bf16.mxu0 0
        %719 = vmatpush1.bf16.msra.mxu0 0
        %720 = vmatprep.subr.bf16.mxu0 0
        %721 = vmatpush1.bf16.msra.mxu0 0
        %722 = vmatprep.subr.bf16.mxu0 0
        %723 = vmatpush1.bf16.msra.mxu0 0
        %724 = vmatprep.subr.bf16.mxu0 0
        %725 = vmatpush1.bf16.msra.mxu0 0
        %726 = vmatprep.subr.bf16.mxu0 0
        %727 = vmatpush1.bf16.msra.mxu0 0
        %728 = vmatprep.subr.bf16.mxu0 0
        %729 = vmatpush1.bf16.msra.mxu0 0
        %730 = vmatprep.subr.bf16.mxu0 0
        %731 = vmatpush1.bf16.msra.mxu0 0
        %732 = vmatprep.subr.bf16.mxu0 0
        %733 = vmatpush1.bf16.msra.mxu0 0
        %734 = vmatprep.mubr.bf16.mxu0 0
        %735 = vmatmul.mubr.bf16.gmra.mrb[0].mxu0 %v510
        %v736 = vpop.f32.mrb[0].mxu0
        %v737 = vadd.f32 %v429, %v736
        %v738 = vpop.f32.mrb[0].mxu0
        %v739 = vadd.f32 %v433, %v738
        %v740 = vpop.f32.mrb[0].mxu0
        %v741 = vadd.f32 %v429, %v740
        %v742 = vpop.f32.mrb[0].mxu0
        %v743 = vadd.f32 %v433, %v742
        %744 = vmatprep.mubr.bf16.mxu0 0
        %745 = vmatmul.mubr.bf16.gmra.mrb[0].mxu0 %v511
        %v746 = vpop.f32.mrb[0].mxu0
        %v747 = vadd.f32 %v429, %v746
        %v748 = vpop.f32.mrb[0].mxu0
        %v749 = vadd.f32 %v433, %v748
        %v750 = vpop.f32.mrb[0].mxu0
        %v751 = vadd.f32 %v429, %v750
        %v752 = vpop.f32.mrb[0].mxu0
        %v753 = vadd.f32 %v433, %v752
        %754 = vmatprep.mubr.bf16.mxu0 0
        %755 = vmatmul.mubr.bf16.gmra.mrb[0].mxu0 %v512
        %v756 = vpop.f32.mrb[0].mxu0
        %v757 = vadd.f32 %v429, %v756
        %v758 = vpop.f32.mrb[0].mxu0
        %v759 = vadd.f32 %v433, %v758
        %v760 = vpop.f32.mrb[0].mxu0
        %v761 = vadd.f32 %v429, %v760
        %v762 = vpop.f32.mrb[0].mxu0
        %v763 = vadd.f32 %v433, %v762
        %764 = vmatprep.mubr.bf16.mxu0 0
        %765 = vmatmul.mubr.bf16.gmra.mrb[0].mxu0 %v513
        %v766 = vpop.f32.mrb[0].mxu0
        %v767 = vadd.f32 %v429, %v766
        %v768 = vpop.f32.mrb[0].mxu0
        %v769 = vadd.f32 %v433, %v768
        %v770 = vpop.f32.mrb[0].mxu0
        %v771 = vadd.f32 %v429, %v770
        %v772 = vpop.f32.mrb[0].mxu0
        %v773 = vadd.f32 %v433, %v772
        %774 = vmatprep.mubr.bf16.mxu0 0
        %775 = vmatmul.mubr.bf16.gmra.mrb[0].mxu0 %v514
        %v776 = vpop.f32.mrb[0].mxu0
        %v777 = vadd.f32 %v429, %v776
        %v778 = vpop.f32.mrb[0].mxu0
        %v779 = vadd.f32 %v433, %v778
        %v780 = vpop.f32.mrb[0].mxu0
        %v781 = vadd.f32 %v429, %v780
        %v782 = vpop.f32.mrb[0].mxu0
        %v783 = vadd.f32 %v433, %v782
        %784 = vmatprep.mubr.bf16.mxu0 0
        %785 = vmatmul.mubr.bf16.gmra.mrb[0].mxu0 %v515
        %v786 = vpop.f32.mrb[0].mxu0
        %v787 = vadd.f32 %v429, %v786
        %v788 = vpop.f32.mrb[0].mxu0
        %v789 = vadd.f32 %v433, %v788
        %v790 = vpop.f32.mrb[0].mxu0
        %v791 = vadd.f32 %v429, %v790
        %v792 = vpop.f32.mrb[0].mxu0
        %v793 = vadd.f32 %v433, %v792
        %794 = vmatprep.mubr.bf16.mxu0 0
        %795 = vmatmul.mubr.bf16.gmra.mrb[0].mxu0 %v516
        %v796 = vpop.f32.mrb[0].mxu0
        %v797 = vadd.f32 %v429, %v796
        %v798 = vpop.f32.mrb[0].mxu0
        %v799 = vadd.f32 %v433, %v798
        %v800 = vpop.f32.mrb[0].mxu0
        %v801 = vadd.f32 %v429, %v800
        %v802 = vpop.f32.mrb[0].mxu0
        %v803 = vadd.f32 %v433, %v802
        %804 = vmatprep.mubr.bf16.mxu0 0
        %805 = vmatmul.mubr.bf16.gmra.mrb[0].mxu0 %v517
        %v806 = vpop.f32.mrb[0].mxu0
        %v807 = vadd.f32 %v429, %v806
        %v808 = vpop.f32.mrb[0].mxu0
        %v809 = vadd.f32 %v433, %v808
        %v810 = vpop.f32.mrb[0].mxu0
        %v811 = vadd.f32 %v429, %v810
        %v812 = vpop.f32.mrb[0].mxu0
        %v813 = vadd.f32 %v433, %v812
        %814 = vmatprep.mubr.bf16.mxu0 0
        %815 = vmatmul.mubr.bf16.gmra.mrb[0].mxu0 %v518
        %v816 = vpop.f32.mrb[0].mxu0
        %v817 = vadd.f32 %v429, %v816
        %v818 = vpop.f32.mrb[0].mxu0
        %v819 = vadd.f32 %v433, %v818
        %v820 = vpop.f32.mrb[0].mxu0
        %v821 = vadd.f32 %v429, %v820
        %v822 = vpop.f32.mrb[0].mxu0
        %v823 = vadd.f32 %v433, %v822
        %824 = vmatprep.mubr.bf16.mxu0 0
        %825 = vmatmul.mubr.bf16.gmra.mrb[0].mxu0 %v519
        %v826 = vpop.f32.mrb[0].mxu0
        %v827 = vadd.f32 %v429, %v826
        %v828 = vpop.f32.mrb[0].mxu0
        %v829 = vadd.f32 %v433, %v828
        %v830 = vpop.f32.mrb[0].mxu0
        %v831 = vadd.f32 %v429, %v830
        %v832 = vpop.f32.mrb[0].mxu0
        %v833 = vadd.f32 %v433, %v832
        %834 = vmatprep.mubr.bf16.mxu0 0
        %835 = vmatmul.mubr.bf16.gmra.mrb[0].mxu0 %v520
        %v836 = vpop.f32.mrb[0].mxu0
        %v837 = vadd.f32 %v429, %v836
        %v838 = vpop.f32.mrb[0].mxu0
        %v839 = vadd.f32 %v433, %v838
        %v840 = vpop.f32.mrb[0].mxu0
        %v841 = vadd.f32 %v429, %v840
        %v842 = vpop.f32.mrb[0].mxu0
        %v843 = vadd.f32 %v433, %v842
        %844 = vmatprep.mubr.bf16.mxu0 0
        %845 = vmatmul.mubr.bf16.gmra.mrb[0].mxu0 %v521
        %v846 = vpop.f32.mrb[0].mxu0
        %v847 = vadd.f32 %v429, %v846
        %v848 = vpop.f32.mrb[0].mxu0
        %v849 = vadd.f32 %v433, %v848
        %v850 = vpop.f32.mrb[0].mxu0
        %v851 = vadd.f32 %v429, %v850
        %v852 = vpop.f32.mrb[0].mxu0
        %v853 = vadd.f32 %v433, %v852
        %854 = vmatprep.mubr.bf16.mxu0 0
        %855 = vmatmul.mubr.bf16.gmra.mrb[0].mxu0 %v522
        %v856 = vpop.f32.mrb[0].mxu0
        %v857 = vadd.f32 %v429, %v856
        %v858 = vpop.f32.mrb[0].mxu0
        %v859 = vadd.f32 %v433, %v858
        %v860 = vpop.f32.mrb[0].mxu0
        %v861 = vadd.f32 %v429, %v860
        %v862 = vpop.f32.mrb[0].mxu0
        %v863 = vadd.f32 %v433, %v862
        %864 = vmatprep.mubr.bf16.mxu0 0
        %865 = vmatmul.mubr.bf16.gmra.mrb[0].mxu0 %v523
        %v866 = vpop.f32.mrb[0].mxu0
        %v867 = vadd.f32 %v429, %v866
        %v868 = vpop.f32.mrb[0].mxu0
        %v869 = vadd.f32 %v433, %v868
        %v870 = vpop.f32.mrb[0].mxu0
        %v871 = vadd.f32 %v429, %v870
        %v872 = vpop.f32.mrb[0].mxu0
        %v873 = vadd.f32 %v433, %v872
        %874 = vmatprep.mubr.bf16.mxu0 0
        %875 = vmatmul.mubr.bf16.gmra.mrb[0].mxu0 %v524
        %v876 = vpop.f32.mrb[0].mxu0
        %v877 = vadd.f32 %v429, %v876
        %v878 = vpop.f32.mrb[0].mxu0
        %v879 = vadd.f32 %v433, %v878
        %v880 = vpop.f32.mrb[0].mxu0
        %v881 = vadd.f32 %v429, %v880
        %v882 = vpop.f32.mrb[0].mxu0
        %v883 = vadd.f32 %v433, %v882
        %884 = vmatprep.mubr.bf16.mxu0 0
        %885 = vmatmul.mubr.bf16.gmra.mrb[0].mxu0 %v525
        %v886 = vpop.f32.mrb[0].mxu0
        %v887 = vadd.f32 %v429, %v886
        %v888 = vpop.f32.mrb[0].mxu0
        %v889 = vadd.f32 %v433, %v888
        %v890 = vpop.f32.mrb[0].mxu0
        %v891 = vadd.f32 %v429, %v890
        %v892 = vpop.f32.mrb[0].mxu0
        %v893 = vadd.f32 %v433, %v892
        %894 = vdwg.mxu0
        %895 = vmatprep.subr.bf16.mxu0 %v641
        %896 = vmatpush1.bf16.msra.mxu0 %v640
        %897 = vmatprep.subr.bf16.mxu0 %v645
        %898 = vmatpush1.bf16.msra.mxu0 %v644
        %899 = vmatprep.subr.bf16.mxu0 %v649
        %900 = vmatpush1.bf16.msra.mxu0 %v648
        %901 = vmatprep.subr.bf16.mxu0 %v653
        %902 = vmatpush1.bf16.msra.mxu0 %v652
        %903 = vmatprep.subr.bf16.mxu0 %v657
        %904 = vmatpush1.bf16.msra.mxu0 %v656
        %905 = vmatprep.subr.bf16.mxu0 %v661
        %906 = vmatpush1.bf16.msra.mxu0 %v660
        %907 = vmatprep.subr.bf16.mxu0 %v665
        %908 = vmatpush1.bf16.msra.mxu0 %v664
        %909 = vmatprep.subr.bf16.mxu0 %v669
        %910 = vmatpush1.bf16.msra.mxu0 %v668
        %911 = vmatprep.subr.bf16.mxu0 0
        %912 = vmatpush1.bf16.msra.mxu0 0
        %913 = vmatprep.subr.bf16.mxu0 0
        %914 = vmatpush1.bf16.msra.mxu0 0
        %915 = vmatprep.subr.bf16.mxu0 0
        %916 = vmatpush1.bf16.msra.mxu0 0
        %917 = vmatprep.subr.bf16.mxu0 0
        %918 = vmatpush1.bf16.msra.mxu0 0
        %919 = vmatprep.subr.bf16.mxu0 0
        %920 = vmatpush1.bf16.msra.mxu0 0
        %921 = vmatprep.subr.bf16.mxu0 0
        %922 = vmatpush1.bf16.msra.mxu0 0
        %923 = vmatprep.subr.bf16.mxu0 0
        %924 = vmatpush1.bf16.msra.mxu0 0
        %925 = vmatprep.subr.bf16.mxu0 0
        %926 = vmatpush1.bf16.msra.mxu0 0
        %927 = vmatprep.mubr.bf16.mxu0 0
        %928 = vmatmul.mubr.bf16.gmra.mrb[0].mxu0 %v510
        %v929 = vpop.f32.mrb[0].mxu0
        %v930 = vadd.f32 %v437, %v929
        %v931 = vpop.f32.mrb[0].mxu0
        %v932 = vadd.f32 %v441, %v931
        %v933 = vpop.f32.mrb[0].mxu0
        %v934 = vadd.f32 %v437, %v933
        %v935 = vpop.f32.mrb[0].mxu0
        %v936 = vadd.f32 %v441, %v935
        %937 = vmatprep.mubr.bf16.mxu0 0
        %938 = vmatmul.mubr.bf16.gmra.mrb[0].mxu0 %v511
        %v939 = vpop.f32.mrb[0].mxu0
        %v940 = vadd.f32 %v437, %v939
        %v941 = vpop.f32.mrb[0].mxu0
        %v942 = vadd.f32 %v441, %v941
        %v943 = vpop.f32.mrb[0].mxu0
        %v944 = vadd.f32 %v437, %v943
        %v945 = vpop.f32.mrb[0].mxu0
        %v946 = vadd.f32 %v441, %v945
        %947 = vmatprep.mubr.bf16.mxu0 0
        %948 = vmatmul.mubr.bf16.gmra.mrb[0].mxu0 %v512
        %v949 = vpop.f32.mrb[0].mxu0
        %v950 = vadd.f32 %v437, %v949
        %v951 = vpop.f32.mrb[0].mxu0
        %v952 = vadd.f32 %v441, %v951
        %v953 = vpop.f32.mrb[0].mxu0
        %v954 = vadd.f32 %v437, %v953
        %v955 = vpop.f32.mrb[0].mxu0
        %v956 = vadd.f32 %v441, %v955
        %957 = vmatprep.mubr.bf16.mxu0 0
        %958 = vmatmul.mubr.bf16.gmra.mrb[0].mxu0 %v513
        %v959 = vpop.f32.mrb[0].mxu0
        %v960 = vadd.f32 %v437, %v959
        %v961 = vpop.f32.mrb[0].mxu0
        %v962 = vadd.f32 %v441, %v961
        %v963 = vpop.f32.mrb[0].mxu0
        %v964 = vadd.f32 %v437, %v963
        %v965 = vpop.f32.mrb[0].mxu0
        %v966 = vadd.f32 %v441, %v965
        %967 = vmatprep.mubr.bf16.mxu0 0
        %968 = vmatmul.mubr.bf16.gmra.mrb[0].mxu0 %v514
        %v969 = vpop.f32.mrb[0].mxu0
        %v970 = vadd.f32 %v437, %v969
        %v971 = vpop.f32.mrb[0].mxu0
        %v972 = vadd.f32 %v441, %v971
        %v973 = vpop.f32.mrb[0].mxu0
        %v974 = vadd.f32 %v437, %v973
        %v975 = vpop.f32.mrb[0].mxu0
        %v976 = vadd.f32 %v441, %v975
        %977 = vmatprep.mubr.bf16.mxu0 0
        %978 = vmatmul.mubr.bf16.gmra.mrb[0].mxu0 %v515
        %v979 = vpop.f32.mrb[0].mxu0
        %v980 = vadd.f32 %v437, %v979
        %v981 = vpop.f32.mrb[0].mxu0
        %v982 = vadd.f32 %v441, %v981
        %v983 = vpop.f32.mrb[0].mxu0
        %v984 = vadd.f32 %v437, %v983
        %v985 = vpop.f32.mrb[0].mxu0
        %v986 = vadd.f32 %v441, %v985
        %987 = vmatprep.mubr.bf16.mxu0 0
        %988 = vmatmul.mubr.bf16.gmra.mrb[0].mxu0 %v516
        %v989 = vpop.f32.mrb[0].mxu0
        %v990 = vadd.f32 %v437, %v989
        %v991 = vpop.f32.mrb[0].mxu0
        %v992 = vadd.f32 %v441, %v991
        %v993 = vpop.f32.mrb[0].mxu0
        %v994 = vadd.f32 %v437, %v993
        %v995 = vpop.f32.mrb[0].mxu0
        %v996 = vadd.f32 %v441, %v995
        %997 = vmatprep.mubr.bf16.mxu0 0
        %998 = vmatmul.mubr.bf16.gmra.mrb[0].mxu0 %v517
        %v999 = vpop.f32.mrb[0].mxu0
        %v1000 = vadd.f32 %v437, %v999
        %v1001 = vpop.f32.mrb[0].mxu0
        %v1002 = vadd.f32 %v441, %v1001
        %v1003 = vpop.f32.mrb[0].mxu0
        %v1004 = vadd.f32 %v437, %v1003
        %v1005 = vpop.f32.mrb[0].mxu0
        %v1006 = vadd.f32 %v441, %v1005
        %1007 = vmatprep.mubr.bf16.mxu0 0
        %1008 = vmatmul.mubr.bf16.gmra.mrb[0].mxu0 %v518
        %v1009 = vpop.f32.mrb[0].mxu0
        %v1010 = vadd.f32 %v437, %v1009
        %v1011 = vpop.f32.mrb[0].mxu0
        %v1012 = vadd.f32 %v441, %v1011
        %v1013 = vpop.f32.mrb[0].mxu0
        %v1014 = vadd.f32 %v437, %v1013
        %v1015 = vpop.f32.mrb[0].mxu0
        %v1016 = vadd.f32 %v441, %v1015
        %1017 = vmatprep.mubr.bf16.mxu0 0
        %1018 = vmatmul.mubr.bf16.gmra.mrb[0].mxu0 %v519
        %v1019 = vpop.f32.mrb[0].mxu0
        %v1020 = vadd.f32 %v437, %v1019
        %v1021 = vpop.f32.mrb[0].mxu0
        %v1022 = vadd.f32 %v441, %v1021
        %v1023 = vpop.f32.mrb[0].mxu0
        %v1024 = vadd.f32 %v437, %v1023
        %v1025 = vpop.f32.mrb[0].mxu0
        %v1026 = vadd.f32 %v441, %v1025
        %1027 = vmatprep.mubr.bf16.mxu0 0
        %1028 = vmatmul.mubr.bf16.gmra.mrb[0].mxu0 %v520
        %v1029 = vpop.f32.mrb[0].mxu0
        %v1030 = vadd.f32 %v437, %v1029
        %v1031 = vpop.f32.mrb[0].mxu0
        %v1032 = vadd.f32 %v441, %v1031
        %v1033 = vpop.f32.mrb[0].mxu0
        %v1034 = vadd.f32 %v437, %v1033
        %v1035 = vpop.f32.mrb[0].mxu0
        %v1036 = vadd.f32 %v441, %v1035
        %1037 = vmatprep.mubr.bf16.mxu0 0
        %1038 = vmatmul.mubr.bf16.gmra.mrb[0].mxu0 %v521
        %v1039 = vpop.f32.mrb[0].mxu0
        %v1040 = vadd.f32 %v437, %v1039
        %v1041 = vpop.f32.mrb[0].mxu0
        %v1042 = vadd.f32 %v441, %v1041
        %v1043 = vpop.f32.mrb[0].mxu0
        %v1044 = vadd.f32 %v437, %v1043
        %v1045 = vpop.f32.mrb[0].mxu0
        %v1046 = vadd.f32 %v441, %v1045
        %1047 = vmatprep.mubr.bf16.mxu0 0
        %1048 = vmatmul.mubr.bf16.gmra.mrb[0].mxu0 %v522
        %v1049 = vpop.f32.mrb[0].mxu0
        %v1050 = vadd.f32 %v437, %v1049
        %v1051 = vpop.f32.mrb[0].mxu0
        %v1052 = vadd.f32 %v441, %v1051
        %v1053 = vpop.f32.mrb[0].mxu0
        %v1054 = vadd.f32 %v437, %v1053
        %v1055 = vpop.f32.mrb[0].mxu0
        %v1056 = vadd.f32 %v441, %v1055
        %1057 = vmatprep.mubr.bf16.mxu0 0
        %1058 = vmatmul.mubr.bf16.gmra.mrb[0].mxu0 %v523
        %v1059 = vpop.f32.mrb[0].mxu0
        %v1060 = vadd.f32 %v437, %v1059
        %v1061 = vpop.f32.mrb[0].mxu0
        %v1062 = vadd.f32 %v441, %v1061
        %v1063 = vpop.f32.mrb[0].mxu0
        %v1064 = vadd.f32 %v437, %v1063
        %v1065 = vpop.f32.mrb[0].mxu0
        %v1066 = vadd.f32 %v441, %v1065
        %1067 = vmatprep.mubr.bf16.mxu0 0
        %1068 = vmatmul.mubr.bf16.gmra.mrb[0].mxu0 %v524
        %v1069 = vpop.f32.mrb[0].mxu0
        %v1070 = vadd.f32 %v437, %v1069
        %v1071 = vpop.f32.mrb[0].mxu0
        %v1072 = vadd.f32 %v441, %v1071
        %v1073 = vpop.f32.mrb[0].mxu0
        %v1074 = vadd.f32 %v437, %v1073
        %v1075 = vpop.f32.mrb[0].mxu0
        %v1076 = vadd.f32 %v441, %v1075
        %1077 = vmatprep.mubr.bf16.mxu0 0
        %1078 = vmatmul.mubr.bf16.gmra.mrb[0].mxu0 %v525
        %v1079 = vpop.f32.mrb[0].mxu0
        %v1080 = vadd.f32 %v437, %v1079
        %v1081 = vpop.f32.mrb[0].mxu0
        %v1082 = vadd.f32 %v441, %v1081
        %v1083 = vpop.f32.mrb[0].mxu0
        %v1084 = vadd.f32 %v437, %v1083
        %v1085 = vpop.f32.mrb[0].mxu0
        %v1086 = vadd.f32 %v441, %v1085
        %1087 = vdwg.mxu0
        %v1088 = vmul.f32 %v737, %v737
        %v1089 = vmul.f32 %v739, %v739
        %v1090 = vmul.f32 %v930, %v930
        %v1091 = vmul.f32 %v932, %v932
        %v1092 = vmul.f32 %v741, %v741
        %v1093 = vmul.f32 %v743, %v743
        %v1094 = vmul.f32 %v934, %v934
        %v1095 = vmul.f32 %v936, %v936
        %v1096 = vmul.f32 %v747, %v747
        %v1097 = vmul.f32 %v749, %v749
        %v1098 = vmul.f32 %v940, %v940
        %v1099 = vmul.f32 %v942, %v942
        %v1100 = vmul.f32 %v751, %v751
        %v1101 = vmul.f32 %v753, %v753
        %v1102 = vmul.f32 %v944, %v944
        %v1103 = vmul.f32 %v946, %v946
        %v1104 = vmul.f32 %v757, %v757
        %v1105 = vmul.f32 %v759, %v759
        %v1106 = vmul.f32 %v950, %v950
        %v1107 = vmul.f32 %v952, %v952
        %v1108 = vmul.f32 %v761, %v761
        %v1109 = vmul.f32 %v763, %v763
        %v1110 = vmul.f32 %v954, %v954
        %v1111 = vmul.f32 %v956, %v956
        %v1112 = vmul.f32 %v767, %v767
        %v1113 = vmul.f32 %v769, %v769
        %v1114 = vmul.f32 %v960, %v960
        %v1115 = vmul.f32 %v962, %v962
        %v1116 = vmul.f32 %v771, %v771
        %v1117 = vmul.f32 %v773, %v773
        %v1118 = vmul.f32 %v964, %v964
        %v1119 = vmul.f32 %v966, %v966
        %v1120 = vmul.f32 %v777, %v777
        %v1121 = vmul.f32 %v779, %v779
        %v1122 = vmul.f32 %v970, %v970
        %v1123 = vmul.f32 %v972, %v972
        %v1124 = vmul.f32 %v781, %v781
        %v1125 = vmul.f32 %v783, %v783
        %v1126 = vmul.f32 %v974, %v974
        %v1127 = vmul.f32 %v976, %v976
        %v1128 = vmul.f32 %v787, %v787
        %v1129 = vmul.f32 %v789, %v789
        %v1130 = vmul.f32 %v980, %v980
        %v1131 = vmul.f32 %v982, %v982
        %v1132 = vmul.f32 %v791, %v791
        %v1133 = vmul.f32 %v793, %v793
        %v1134 = vmul.f32 %v984, %v984
        %v1135 = vmul.f32 %v986, %v986
        %v1136 = vmul.f32 %v797, %v797
        %v1137 = vmul.f32 %v799, %v799
        %v1138 = vmul.f32 %v990, %v990
        %v1139 = vmul.f32 %v992, %v992
        %v1140 = vmul.f32 %v801, %v801
        %v1141 = vmul.f32 %v803, %v803
        %v1142 = vmul.f32 %v994, %v994
        %v1143 = vmul.f32 %v996, %v996
        %v1144 = vmul.f32 %v807, %v807
        %v1145 = vmul.f32 %v809, %v809
        %v1146 = vmul.f32 %v1000, %v1000
        %v1147 = vmul.f32 %v1002, %v1002
        %v1148 = vmul.f32 %v811, %v811
        %v1149 = vmul.f32 %v813, %v813
        %v1150 = vmul.f32 %v1004, %v1004
        %v1151 = vmul.f32 %v1006, %v1006
        %v1152 = vmul.f32 %v817, %v817
        %v1153 = vmul.f32 %v819, %v819
        %v1154 = vmul.f32 %v1010, %v1010
        %v1155 = vmul.f32 %v1012, %v1012
        %v1156 = vmul.f32 %v821, %v821
        %v1157 = vmul.f32 %v823, %v823
        %v1158 = vmul.f32 %v1014, %v1014
        %v1159 = vmul.f32 %v1016, %v1016
        %v1160 = vmul.f32 %v827, %v827
        %v1161 = vmul.f32 %v829, %v829
        %v1162 = vmul.f32 %v1020, %v1020
        %v1163 = vmul.f32 %v1022, %v1022
        %v1164 = vmul.f32 %v831, %v831
        %v1165 = vmul.f32 %v833, %v833
        %v1166 = vmul.f32 %v1024, %v1024
        %v1167 = vmul.f32 %v1026, %v1026
        %v1168 = vmul.f32 %v837, %v837
        %v1169 = vmul.f32 %v839, %v839
        %v1170 = vmul.f32 %v1030, %v1030
        %v1171 = vmul.f32 %v1032, %v1032
        %v1172 = vmul.f32 %v841, %v841
        %v1173 = vmul.f32 %v843, %v843
        %v1174 = vmul.f32 %v1034, %v1034
        %v1175 = vmul.f32 %v1036, %v1036
        %v1176 = vmul.f32 %v847, %v847
        %v1177 = vmul.f32 %v849, %v849
        %v1178 = vmul.f32 %v1040, %v1040
        %v1179 = vmul.f32 %v1042, %v1042
        %v1180 = vmul.f32 %v851, %v851
        %v1181 = vmul.f32 %v853, %v853
        %v1182 = vmul.f32 %v1044, %v1044
        %v1183 = vmul.f32 %v1046, %v1046
        %v1184 = vmul.f32 %v857, %v857
        %v1185 = vmul.f32 %v859, %v859
        %v1186 = vmul.f32 %v1050, %v1050
        %v1187 = vmul.f32 %v1052, %v1052
        %v1188 = vmul.f32 %v861, %v861
        %v1189 = vmul.f32 %v863, %v863
        %v1190 = vmul.f32 %v1054, %v1054
        %v1191 = vmul.f32 %v1056, %v1056
        %v1192 = vmul.f32 %v867, %v867
        %v1193 = vmul.f32 %v869, %v869
        %v1194 = vmul.f32 %v1060, %v1060
        %v1195 = vmul.f32 %v1062, %v1062
        %v1196 = vmul.f32 %v871, %v871
        %v1197 = vmul.f32 %v873, %v873
        %v1198 = vmul.f32 %v1064, %v1064
        %v1199 = vmul.f32 %v1066, %v1066
        %v1200 = vmul.f32 %v877, %v877
        %v1201 = vmul.f32 %v879, %v879
        %v1202 = vmul.f32 %v1070, %v1070
        %v1203 = vmul.f32 %v1072, %v1072
        %v1204 = vmul.f32 %v881, %v881
        %v1205 = vmul.f32 %v883, %v883
        %v1206 = vmul.f32 %v1074, %v1074
        %v1207 = vmul.f32 %v1076, %v1076
        %v1208 = vmul.f32 %v887, %v887
        %v1209 = vmul.f32 %v889, %v889
        %v1210 = vmul.f32 %v1080, %v1080
        %v1211 = vmul.f32 %v1082, %v1082
        %v1212 = vmul.f32 %v891, %v891
        %v1213 = vmul.f32 %v893, %v893
        %v1214 = vmul.f32 %v1084, %v1084
        %v1215 = vmul.f32 %v1086, %v1086
        %v1216 = vmul.f32 %v737, %v1088
        %v1217 = vmul.f32 %v739, %v1089
        %v1218 = vmul.f32 %v930, %v1090
        %v1219 = vmul.f32 %v932, %v1091
        %v1220 = vmul.f32 %v741, %v1092
        %v1221 = vmul.f32 %v743, %v1093
        %v1222 = vmul.f32 %v934, %v1094
        %v1223 = vmul.f32 %v936, %v1095
        %v1224 = vmul.f32 %v747, %v1096
        %v1225 = vmul.f32 %v749, %v1097
        %v1226 = vmul.f32 %v940, %v1098
        %v1227 = vmul.f32 %v942, %v1099
        %v1228 = vmul.f32 %v751, %v1100
        %v1229 = vmul.f32 %v753, %v1101
        %v1230 = vmul.f32 %v944, %v1102
        %v1231 = vmul.f32 %v946, %v1103
        %v1232 = vmul.f32 %v757, %v1104
        %v1233 = vmul.f32 %v759, %v1105
        %v1234 = vmul.f32 %v950, %v1106
        %v1235 = vmul.f32 %v952, %v1107
        %v1236 = vmul.f32 %v761, %v1108
        %v1237 = vmul.f32 %v763, %v1109
        %v1238 = vmul.f32 %v954, %v1110
        %v1239 = vmul.f32 %v956, %v1111
        %v1240 = vmul.f32 %v767, %v1112
        %v1241 = vmul.f32 %v769, %v1113
        %v1242 = vmul.f32 %v960, %v1114
        %v1243 = vmul.f32 %v962, %v1115
        %v1244 = vmul.f32 %v771, %v1116
        %v1245 = vmul.f32 %v773, %v1117
        %v1246 = vmul.f32 %v964, %v1118
        %v1247 = vmul.f32 %v966, %v1119
        %v1248 = vmul.f32 %v777, %v1120
        %v1249 = vmul.f32 %v779, %v1121
        %v1250 = vmul.f32 %v970, %v1122
        %v1251 = vmul.f32 %v972, %v1123
        %v1252 = vmul.f32 %v781, %v1124
        %v1253 = vmul.f32 %v783, %v1125
        %v1254 = vmul.f32 %v974, %v1126
        %v1255 = vmul.f32 %v976, %v1127
        %v1256 = vmul.f32 %v787, %v1128
        %v1257 = vmul.f32 %v789, %v1129
        %v1258 = vmul.f32 %v980, %v1130
        %v1259 = vmul.f32 %v982, %v1131
        %v1260 = vmul.f32 %v791, %v1132
        %v1261 = vmul.f32 %v793, %v1133
        %v1262 = vmul.f32 %v984, %v1134
        %v1263 = vmul.f32 %v986, %v1135
        %v1264 = vmul.f32 %v797, %v1136
        %v1265 = vmul.f32 %v799, %v1137
        %v1266 = vmul.f32 %v990, %v1138
        %v1267 = vmul.f32 %v992, %v1139
        %v1268 = vmul.f32 %v801, %v1140
        %v1269 = vmul.f32 %v803, %v1141
        %v1270 = vmul.f32 %v994, %v1142
        %v1271 = vmul.f32 %v996, %v1143
        %v1272 = vmul.f32 %v807, %v1144
        %v1273 = vmul.f32 %v809, %v1145
        %v1274 = vmul.f32 %v1000, %v1146
        %v1275 = vmul.f32 %v1002, %v1147
        %v1276 = vmul.f32 %v811, %v1148
        %v1277 = vmul.f32 %v813, %v1149
        %v1278 = vmul.f32 %v1004, %v1150
        %v1279 = vmul.f32 %v1006, %v1151
        %v1280 = vmul.f32 %v817, %v1152
        %v1281 = vmul.f32 %v819, %v1153
        %v1282 = vmul.f32 %v1010, %v1154
        %v1283 = vmul.f32 %v1012, %v1155
        %v1284 = vmul.f32 %v821, %v1156
        %v1285 = vmul.f32 %v823, %v1157
        %v1286 = vmul.f32 %v1014, %v1158
        %v1287 = vmul.f32 %v1016, %v1159
        %v1288 = vmul.f32 %v827, %v1160
        %v1289 = vmul.f32 %v829, %v1161
        %v1290 = vmul.f32 %v1020, %v1162
        %v1291 = vmul.f32 %v1022, %v1163
        %v1292 = vmul.f32 %v831, %v1164
        %v1293 = vmul.f32 %v833, %v1165
        %v1294 = vmul.f32 %v1024, %v1166
        %v1295 = vmul.f32 %v1026, %v1167
        %v1296 = vmul.f32 %v837, %v1168
        %v1297 = vmul.f32 %v839, %v1169
        %v1298 = vmul.f32 %v1030, %v1170
        %v1299 = vmul.f32 %v1032, %v1171
        %v1300 = vmul.f32 %v841, %v1172
        %v1301 = vmul.f32 %v843, %v1173
        %v1302 = vmul.f32 %v1034, %v1174
        %v1303 = vmul.f32 %v1036, %v1175
        %v1304 = vmul.f32 %v847, %v1176
        %v1305 = vmul.f32 %v849, %v1177
        %v1306 = vmul.f32 %v1040, %v1178
        %v1307 = vmul.f32 %v1042, %v1179
        %v1308 = vmul.f32 %v851, %v1180
        %v1309 = vmul.f32 %v853, %v1181
        %v1310 = vmul.f32 %v1044, %v1182
        %v1311 = vmul.f32 %v1046, %v1183
        %v1312 = vmul.f32 %v857, %v1184
        %v1313 = vmul.f32 %v859, %v1185
        %v1314 = vmul.f32 %v1050, %v1186
        %v1315 = vmul.f32 %v1052, %v1187
        %v1316 = vmul.f32 %v861, %v1188
        %v1317 = vmul.f32 %v863, %v1189
        %v1318 = vmul.f32 %v1054, %v1190
        %v1319 = vmul.f32 %v1056, %v1191
        %v1320 = vmul.f32 %v867, %v1192
        %v1321 = vmul.f32 %v869, %v1193
        %v1322 = vmul.f32 %v1060, %v1194
        %v1323 = vmul.f32 %v1062, %v1195
        %v1324 = vmul.f32 %v871, %v1196
        %v1325 = vmul.f32 %v873, %v1197
        %v1326 = vmul.f32 %v1064, %v1198
        %v1327 = vmul.f32 %v1066, %v1199
        %v1328 = vmul.f32 %v877, %v1200
        %v1329 = vmul.f32 %v879, %v1201
        %v1330 = vmul.f32 %v1070, %v1202
        %v1331 = vmul.f32 %v1072, %v1203
        %v1332 = vmul.f32 %v881, %v1204
        %v1333 = vmul.f32 %v883, %v1205
        %v1334 = vmul.f32 %v1074, %v1206
        %v1335 = vmul.f32 %v1076, %v1207
        %v1336 = vmul.f32 %v887, %v1208
        %v1337 = vmul.f32 %v889, %v1209
        %v1338 = vmul.f32 %v1080, %v1210
        %v1339 = vmul.f32 %v1082, %v1211
        %v1340 = vmul.f32 %v891, %v1212
        %v1341 = vmul.f32 %v893, %v1213
        %v1342 = vmul.f32 %v1084, %v1214
        %v1343 = vmul.f32 %v1086, %v1215
        %v1344 = vmul.f32 %v1216, 0.044715
        %v1345 = vmul.f32 %v1217, 0.044715
        %v1346 = vmul.f32 %v1218, 0.044715
        %v1347 = vmul.f32 %v1219, 0.044715
        %v1348 = vmul.f32 %v1220, 0.044715
        %v1349 = vmul.f32 %v1221, 0.044715
        %v1350 = vmul.f32 %v1222, 0.044715
        %v1351 = vmul.f32 %v1223, 0.044715
        %v1352 = vmul.f32 %v1224, 0.044715
        %v1353 = vmul.f32 %v1225, 0.044715
        %v1354 = vmul.f32 %v1226, 0.044715
        %v1355 = vmul.f32 %v1227, 0.044715
        %v1356 = vmul.f32 %v1228, 0.044715
        %v1357 = vmul.f32 %v1229, 0.044715
        %v1358 = vmul.f32 %v1230, 0.044715
        %v1359 = vmul.f32 %v1231, 0.044715
        %v1360 = vmul.f32 %v1232, 0.044715
        %v1361 = vmul.f32 %v1233, 0.044715
        %v1362 = vmul.f32 %v1234, 0.044715
        %v1363 = vmul.f32 %v1235, 0.044715
        %v1364 = vmul.f32 %v1236, 0.044715
        %v1365 = vmul.f32 %v1237, 0.044715
        %v1366 = vmul.f32 %v1238, 0.044715
        %v1367 = vmul.f32 %v1239, 0.044715
        %v1368 = vmul.f32 %v1240, 0.044715
        %v1369 = vmul.f32 %v1241, 0.044715
        %v1370 = vmul.f32 %v1242, 0.044715
        %v1371 = vmul.f32 %v1243, 0.044715
        %v1372 = vmul.f32 %v1244, 0.044715
        %v1373 = vmul.f32 %v1245, 0.044715
        %v1374 = vmul.f32 %v1246, 0.044715
        %v1375 = vmul.f32 %v1247, 0.044715
        %v1376 = vmul.f32 %v1248, 0.044715
        %v1377 = vmul.f32 %v1249, 0.044715
        %v1378 = vmul.f32 %v1250, 0.044715
        %v1379 = vmul.f32 %v1251, 0.044715
        %v1380 = vmul.f32 %v1252, 0.044715
        %v1381 = vmul.f32 %v1253, 0.044715
        %v1382 = vmul.f32 %v1254, 0.044715
        %v1383 = vmul.f32 %v1255, 0.044715
        %v1384 = vmul.f32 %v1256, 0.044715
        %v1385 = vmul.f32 %v1257, 0.044715
        %v1386 = vmul.f32 %v1258, 0.044715
        %v1387 = vmul.f32 %v1259, 0.044715
        %v1388 = vmul.f32 %v1260, 0.044715
        %v1389 = vmul.f32 %v1261, 0.044715
        %v1390 = vmul.f32 %v1262, 0.044715
        %v1391 = vmul.f32 %v1263, 0.044715
        %v1392 = vmul.f32 %v1264, 0.044715
        %v1393 = vmul.f32 %v1265, 0.044715
        %v1394 = vmul.f32 %v1266, 0.044715
        %v1395 = vmul.f32 %v1267, 0.044715
        %v1396 = vmul.f32 %v1268, 0.044715
        %v1397 = vmul.f32 %v1269, 0.044715
        %v1398 = vmul.f32 %v1270, 0.044715
        %v1399 = vmul.f32 %v1271, 0.044715
        %v1400 = vmul.f32 %v1272, 0.044715
        %v1401 = vmul.f32 %v1273, 0.044715
        %v1402 = vmul.f32 %v1274, 0.044715
        %v1403 = vmul.f32 %v1275, 0.044715
        %v1404 = vmul.f32 %v1276, 0.044715
        %v1405 = vmul.f32 %v1277, 0.044715
        %v1406 = vmul.f32 %v1278, 0.044715
        %v1407 = vmul.f32 %v1279, 0.044715
        %v1408 = vmul.f32 %v1280, 0.044715
        %v1409 = vmul.f32 %v1281, 0.044715
        %v1410 = vmul.f32 %v1282, 0.044715
        %v1411 = vmul.f32 %v1283, 0.044715
        %v1412 = vmul.f32 %v1284, 0.044715
        %v1413 = vmul.f32 %v1285, 0.044715
        %v1414 = vmul.f32 %v1286, 0.044715
        %v1415 = vmul.f32 %v1287, 0.044715
        %v1416 = vmul.f32 %v1288, 0.044715
        %v1417 = vmul.f32 %v1289, 0.044715
        %v1418 = vmul.f32 %v1290, 0.044715
        %v1419 = vmul.f32 %v1291, 0.044715
        %v1420 = vmul.f32 %v1292, 0.044715
        %v1421 = vmul.f32 %v1293, 0.044715
        %v1422 = vmul.f32 %v1294, 0.044715
        %v1423 = vmul.f32 %v1295, 0.044715
        %v1424 = vmul.f32 %v1296, 0.044715
        %v1425 = vmul.f32 %v1297, 0.044715
        %v1426 = vmul.f32 %v1298, 0.044715
        %v1427 = vmul.f32 %v1299, 0.044715
        %v1428 = vmul.f32 %v1300, 0.044715
        %v1429 = vmul.f32 %v1301, 0.044715
        %v1430 = vmul.f32 %v1302, 0.044715
        %v1431 = vmul.f32 %v1303, 0.044715
        %v1432 = vmul.f32 %v1304, 0.044715
        %v1433 = vmul.f32 %v1305, 0.044715
        %v1434 = vmul.f32 %v1306, 0.044715
        %v1435 = vmul.f32 %v1307, 0.044715
        %v1436 = vmul.f32 %v1308, 0.044715
        %v1437 = vmul.f32 %v1309, 0.044715
        %v1438 = vmul.f32 %v1310, 0.044715
        %v1439 = vmul.f32 %v1311, 0.044715
        %v1440 = vmul.f32 %v1312, 0.044715
        %v1441 = vmul.f32 %v1313, 0.044715
        %v1442 = vmul.f32 %v1314, 0.044715
        %v1443 = vmul.f32 %v1315, 0.044715
        %v1444 = vmul.f32 %v1316, 0.044715
        %v1445 = vmul.f32 %v1317, 0.044715
        %v1446 = vmul.f32 %v1318, 0.044715
        %v1447 = vmul.f32 %v1319, 0.044715
        %v1448 = vmul.f32 %v1320, 0.044715
        %v1449 = vmul.f32 %v1321, 0.044715
        %v1450 = vmul.f32 %v1322, 0.044715
        %v1451 = vmul.f32 %v1323, 0.044715
        %v1452 = vmul.f32 %v1324, 0.044715
        %v1453 = vmul.f32 %v1325, 0.044715
        %v1454 = vmul.f32 %v1326, 0.044715
        %v1455 = vmul.f32 %v1327, 0.044715
        %v1456 = vmul.f32 %v1328, 0.044715
        %v1457 = vmul.f32 %v1329, 0.044715
        %v1458 = vmul.f32 %v1330, 0.044715
        %v1459 = vmul.f32 %v1331, 0.044715
        %v1460 = vmul.f32 %v1332, 0.044715
        %v1461 = vmul.f32 %v1333, 0.044715
        %v1462 = vmul.f32 %v1334, 0.044715
        %v1463 = vmul.f32 %v1335, 0.044715
        %v1464 = vmul.f32 %v1336, 0.044715
        %v1465 = vmul.f32 %v1337, 0.044715
        %v1466 = vmul.f32 %v1338, 0.044715
        %v1467 = vmul.f32 %v1339, 0.044715
        %v1468 = vmul.f32 %v1340, 0.044715
        %v1469 = vmul.f32 %v1341, 0.044715
        %v1470 = vmul.f32 %v1342, 0.044715
        %v1471 = vmul.f32 %v1343, 0.044715
        %v1472 = vadd.f32 %v737, %v1344
        %v1473 = vadd.f32 %v739, %v1345
        %v1474 = vadd.f32 %v930, %v1346
        %v1475 = vadd.f32 %v932, %v1347
        %v1476 = vadd.f32 %v741, %v1348
        %v1477 = vadd.f32 %v743, %v1349
        %v1478 = vadd.f32 %v934, %v1350
        %v1479 = vadd.f32 %v936, %v1351
        %v1480 = vadd.f32 %v747, %v1352
        %v1481 = vadd.f32 %v749, %v1353
        %v1482 = vadd.f32 %v940, %v1354
        %v1483 = vadd.f32 %v942, %v1355
        %v1484 = vadd.f32 %v751, %v1356
        %v1485 = vadd.f32 %v753, %v1357
        %v1486 = vadd.f32 %v944, %v1358
        %v1487 = vadd.f32 %v946, %v1359
        %v1488 = vadd.f32 %v757, %v1360
        %v1489 = vadd.f32 %v759, %v1361
        %v1490 = vadd.f32 %v950, %v1362
        %v1491 = vadd.f32 %v952, %v1363
        %v1492 = vadd.f32 %v761, %v1364
        %v1493 = vadd.f32 %v763, %v1365
        %v1494 = vadd.f32 %v954, %v1366
        %v1495 = vadd.f32 %v956, %v1367
        %v1496 = vadd.f32 %v767, %v1368
        %v1497 = vadd.f32 %v769, %v1369
        %v1498 = vadd.f32 %v960, %v1370
        %v1499 = vadd.f32 %v962, %v1371
        %v1500 = vadd.f32 %v771, %v1372
        %v1501 = vadd.f32 %v773, %v1373
        %v1502 = vadd.f32 %v964, %v1374
        %v1503 = vadd.f32 %v966, %v1375
        %v1504 = vadd.f32 %v777, %v1376
        %v1505 = vadd.f32 %v779, %v1377
        %v1506 = vadd.f32 %v970, %v1378
        %v1507 = vadd.f32 %v972, %v1379
        %v1508 = vadd.f32 %v781, %v1380
        %v1509 = vadd.f32 %v783, %v1381
        %v1510 = vadd.f32 %v974, %v1382
        %v1511 = vadd.f32 %v976, %v1383
        %v1512 = vadd.f32 %v787, %v1384
        %v1513 = vadd.f32 %v789, %v1385
        %v1514 = vadd.f32 %v980, %v1386
        %v1515 = vadd.f32 %v982, %v1387
        %v1516 = vadd.f32 %v791, %v1388
        %v1517 = vadd.f32 %v793, %v1389
        %v1518 = vadd.f32 %v984, %v1390
        %v1519 = vadd.f32 %v986, %v1391
        %v1520 = vadd.f32 %v797, %v1392
        %v1521 = vadd.f32 %v799, %v1393
        %v1522 = vadd.f32 %v990, %v1394
        %v1523 = vadd.f32 %v992, %v1395
        %v1524 = vadd.f32 %v801, %v1396
        %v1525 = vadd.f32 %v803, %v1397
        %v1526 = vadd.f32 %v994, %v1398
        %v1527 = vadd.f32 %v996, %v1399
        %v1528 = vadd.f32 %v807, %v1400
        %v1529 = vadd.f32 %v809, %v1401
        %v1530 = vadd.f32 %v1000, %v1402
        %v1531 = vadd.f32 %v1002, %v1403
        %v1532 = vadd.f32 %v811, %v1404
        %v1533 = vadd.f32 %v813, %v1405
        %v1534 = vadd.f32 %v1004, %v1406
        %v1535 = vadd.f32 %v1006, %v1407
        %v1536 = vadd.f32 %v817, %v1408
        %v1537 = vadd.f32 %v819, %v1409
        %v1538 = vadd.f32 %v1010, %v1410
        %v1539 = vadd.f32 %v1012, %v1411
        %v1540 = vadd.f32 %v821, %v1412
        %v1541 = vadd.f32 %v823, %v1413
        %v1542 = vadd.f32 %v1014, %v1414
        %v1543 = vadd.f32 %v1016, %v1415
        %v1544 = vadd.f32 %v827, %v1416
        %v1545 = vadd.f32 %v829, %v1417
        %v1546 = vadd.f32 %v1020, %v1418
        %v1547 = vadd.f32 %v1022, %v1419
        %v1548 = vadd.f32 %v831, %v1420
        %v1549 = vadd.f32 %v833, %v1421
        %v1550 = vadd.f32 %v1024, %v1422
        %v1551 = vadd.f32 %v1026, %v1423
        %v1552 = vadd.f32 %v837, %v1424
        %v1553 = vadd.f32 %v839, %v1425
        %v1554 = vadd.f32 %v1030, %v1426
        %v1555 = vadd.f32 %v1032, %v1427
        %v1556 = vadd.f32 %v841, %v1428
        %v1557 = vadd.f32 %v843, %v1429
        %v1558 = vadd.f32 %v1034, %v1430
        %v1559 = vadd.f32 %v1036, %v1431
        %v1560 = vadd.f32 %v847, %v1432
        %v1561 = vadd.f32 %v849, %v1433
        %v1562 = vadd.f32 %v1040, %v1434
        %v1563 = vadd.f32 %v1042, %v1435
        %v1564 = vadd.f32 %v851, %v1436
        %v1565 = vadd.f32 %v853, %v1437
        %v1566 = vadd.f32 %v1044, %v1438
        %v1567 = vadd.f32 %v1046, %v1439
        %v1568 = vadd.f32 %v857, %v1440
        %v1569 = vadd.f32 %v859, %v1441
        %v1570 = vadd.f32 %v1050, %v1442
        %v1571 = vadd.f32 %v1052, %v1443
        %v1572 = vadd.f32 %v861, %v1444
        %v1573 = vadd.f32 %v863, %v1445
        %v1574 = vadd.f32 %v1054, %v1446
        %v1575 = vadd.f32 %v1056, %v1447
        %v1576 = vadd.f32 %v867, %v1448
        %v1577 = vadd.f32 %v869, %v1449
        %v1578 = vadd.f32 %v1060, %v1450
        %v1579 = vadd.f32 %v1062, %v1451
        %v1580 = vadd.f32 %v871, %v1452
        %v1581 = vadd.f32 %v873, %v1453
        %v1582 = vadd.f32 %v1064, %v1454
        %v1583 = vadd.f32 %v1066, %v1455
        %v1584 = vadd.f32 %v877, %v1456
        %v1585 = vadd.f32 %v879, %v1457
        %v1586 = vadd.f32 %v1070, %v1458
        %v1587 = vadd.f32 %v1072, %v1459
        %v1588 = vadd.f32 %v881, %v1460
        %v1589 = vadd.f32 %v883, %v1461
        %v1590 = vadd.f32 %v1074, %v1462
        %v1591 = vadd.f32 %v1076, %v1463
        %v1592 = vadd.f32 %v887, %v1464
        %v1593 = vadd.f32 %v889, %v1465
        %v1594 = vadd.f32 %v1080, %v1466
        %v1595 = vadd.f32 %v1082, %v1467
        %v1596 = vadd.f32 %v891, %v1468
        %v1597 = vadd.f32 %v893, %v1469
        %v1598 = vadd.f32 %v1084, %v1470
        %v1599 = vadd.f32 %v1086, %v1471
        %v1600 = vmul.f32 %v1472, 0.7978846
        %v1601 = vmul.f32 %v1473, 0.7978846
        %v1602 = vmul.f32 %v1474, 0.7978846
        %v1603 = vmul.f32 %v1475, 0.7978846
        %v1604 = vmul.f32 %v1476, 0.7978846
        %v1605 = vmul.f32 %v1477, 0.7978846
        %v1606 = vmul.f32 %v1478, 0.7978846
        %v1607 = vmul.f32 %v1479, 0.7978846
        %v1608 = vmul.f32 %v1480, 0.7978846
        %v1609 = vmul.f32 %v1481, 0.7978846
        %v1610 = vmul.f32 %v1482, 0.7978846
        %v1611 = vmul.f32 %v1483, 0.7978846
        %v1612 = vmul.f32 %v1484, 0.7978846
        %v1613 = vmul.f32 %v1485, 0.7978846
        %v1614 = vmul.f32 %v1486, 0.7978846
        %v1615 = vmul.f32 %v1487, 0.7978846
        %v1616 = vmul.f32 %v1488, 0.7978846
        %v1617 = vmul.f32 %v1489, 0.7978846
        %v1618 = vmul.f32 %v1490, 0.7978846
        %v1619 = vmul.f32 %v1491, 0.7978846
        %v1620 = vmul.f32 %v1492, 0.7978846
        %v1621 = vmul.f32 %v1493, 0.7978846
        %v1622 = vmul.f32 %v1494, 0.7978846
        %v1623 = vmul.f32 %v1495, 0.7978846
        %v1624 = vmul.f32 %v1496, 0.7978846
        %v1625 = vmul.f32 %v1497, 0.7978846
        %v1626 = vmul.f32 %v1498, 0.7978846
        %v1627 = vmul.f32 %v1499, 0.7978846
        %v1628 = vmul.f32 %v1500, 0.7978846
        %v1629 = vmul.f32 %v1501, 0.7978846
        %v1630 = vmul.f32 %v1502, 0.7978846
        %v1631 = vmul.f32 %v1503, 0.7978846
        %v1632 = vmul.f32 %v1504, 0.7978846
        %v1633 = vmul.f32 %v1505, 0.7978846
        %v1634 = vmul.f32 %v1506, 0.7978846
        %v1635 = vmul.f32 %v1507, 0.7978846
        %v1636 = vmul.f32 %v1508, 0.7978846
        %v1637 = vmul.f32 %v1509, 0.7978846
        %v1638 = vmul.f32 %v1510, 0.7978846
        %v1639 = vmul.f32 %v1511, 0.7978846
        %v1640 = vmul.f32 %v1512, 0.7978846
        %v1641 = vmul.f32 %v1513, 0.7978846
        %v1642 = vmul.f32 %v1514, 0.7978846
        %v1643 = vmul.f32 %v1515, 0.7978846
        %v1644 = vmul.f32 %v1516, 0.7978846
        %v1645 = vmul.f32 %v1517, 0.7978846
        %v1646 = vmul.f32 %v1518, 0.7978846
        %v1647 = vmul.f32 %v1519, 0.7978846
        %v1648 = vmul.f32 %v1520, 0.7978846
        %v1649 = vmul.f32 %v1521, 0.7978846
        %v1650 = vmul.f32 %v1522, 0.7978846
        %v1651 = vmul.f32 %v1523, 0.7978846
        %v1652 = vmul.f32 %v1524, 0.7978846
        %v1653 = vmul.f32 %v1525, 0.7978846
        %v1654 = vmul.f32 %v1526, 0.7978846
        %v1655 = vmul.f32 %v1527, 0.7978846
        %v1656 = vmul.f32 %v1528, 0.7978846
        %v1657 = vmul.f32 %v1529, 0.7978846
        %v1658 = vmul.f32 %v1530, 0.7978846
        %v1659 = vmul.f32 %v1531, 0.7978846
        %v1660 = vmul.f32 %v1532, 0.7978846
        %v1661 = vmul.f32 %v1533, 0.7978846
        %v1662 = vmul.f32 %v1534, 0.7978846
        %v1663 = vmul.f32 %v1535, 0.7978846
        %v1664 = vmul.f32 %v1536, 0.7978846
        %v1665 = vmul.f32 %v1537, 0.7978846
        %v1666 = vmul.f32 %v1538, 0.7978846
        %v1667 = vmul.f32 %v1539, 0.7978846
        %v1668 = vmul.f32 %v1540, 0.7978846
        %v1669 = vmul.f32 %v1541, 0.7978846
        %v1670 = vmul.f32 %v1542, 0.7978846
        %v1671 = vmul.f32 %v1543, 0.7978846
        %v1672 = vmul.f32 %v1544, 0.7978846
        %v1673 = vmul.f32 %v1545, 0.7978846
        %v1674 = vmul.f32 %v1546, 0.7978846
        %v1675 = vmul.f32 %v1547, 0.7978846
        %v1676 = vmul.f32 %v1548, 0.7978846
        %v1677 = vmul.f32 %v1549, 0.7978846
        %v1678 = vmul.f32 %v1550, 0.7978846
        %v1679 = vmul.f32 %v1551, 0.7978846
        %v1680 = vmul.f32 %v1552, 0.7978846
        %v1681 = vmul.f32 %v1553, 0.7978846
        %v1682 = vmul.f32 %v1554, 0.7978846
        %v1683 = vmul.f32 %v1555, 0.7978846
        %v1684 = vmul.f32 %v1556, 0.7978846
        %v1685 = vmul.f32 %v1557, 0.7978846
        %v1686 = vmul.f32 %v1558, 0.7978846
        %v1687 = vmul.f32 %v1559, 0.7978846
        %v1688 = vmul.f32 %v1560, 0.7978846
        %v1689 = vmul.f32 %v1561, 0.7978846
        %v1690 = vmul.f32 %v1562, 0.7978846
        %v1691 = vmul.f32 %v1563, 0.7978846
        %v1692 = vmul.f32 %v1564, 0.7978846
        %v1693 = vmul.f32 %v1565, 0.7978846
        %v1694 = vmul.f32 %v1566, 0.7978846
        %v1695 = vmul.f32 %v1567, 0.7978846
        %v1696 = vmul.f32 %v1568, 0.7978846
        %v1697 = vmul.f32 %v1569, 0.7978846
        %v1698 = vmul.f32 %v1570, 0.7978846
        %v1699 = vmul.f32 %v1571, 0.7978846
        %v1700 = vmul.f32 %v1572, 0.7978846
        %v1701 = vmul.f32 %v1573, 0.7978846
        %v1702 = vmul.f32 %v1574, 0.7978846
        %v1703 = vmul.f32 %v1575, 0.7978846
        %v1704 = vmul.f32 %v1576, 0.7978846
        %v1705 = vmul.f32 %v1577, 0.7978846
        %v1706 = vmul.f32 %v1578, 0.7978846
        %v1707 = vmul.f32 %v1579, 0.7978846
        %v1708 = vmul.f32 %v1580, 0.7978846
        %v1709 = vmul.f32 %v1581, 0.7978846
        %v1710 = vmul.f32 %v1582, 0.7978846
        %v1711 = vmul.f32 %v1583, 0.7978846
        %v1712 = vmul.f32 %v1584, 0.7978846
        %v1713 = vmul.f32 %v1585, 0.7978846
        %v1714 = vmul.f32 %v1586, 0.7978846
        %v1715 = vmul.f32 %v1587, 0.7978846
        %v1716 = vmul.f32 %v1588, 0.7978846
        %v1717 = vmul.f32 %v1589, 0.7978846
        %v1718 = vmul.f32 %v1590, 0.7978846
        %v1719 = vmul.f32 %v1591, 0.7978846
        %v1720 = vmul.f32 %v1592, 0.7978846
        %v1721 = vmul.f32 %v1593, 0.7978846
        %v1722 = vmul.f32 %v1594, 0.7978846
        %v1723 = vmul.f32 %v1595, 0.7978846
        %v1724 = vmul.f32 %v1596, 0.7978846
        %v1725 = vmul.f32 %v1597, 0.7978846
        %v1726 = vmul.f32 %v1598, 0.7978846
        %v1727 = vmul.f32 %v1599, 0.7978846
        %v1728 = vtanh.pop %v1600
        %v1729 = vtanh.pop %v1601
        %v1730 = vtanh.pop %v1602
        %v1731 = vtanh.pop %v1603
        %v1732 = vtanh.pop %v1604
        %v1733 = vtanh.pop %v1605
        %v1734 = vtanh.pop %v1606
        %v1735 = vtanh.pop %v1607
        %v1736 = vtanh.pop %v1608
        %v1737 = vtanh.pop %v1609
        %v1738 = vtanh.pop %v1610
        %v1739 = vtanh.pop %v1611
        %v1740 = vtanh.pop %v1612
        %v1741 = vtanh.pop %v1613
        %v1742 = vtanh.pop %v1614
        %v1743 = vtanh.pop %v1615
        %v1744 = vtanh.pop %v1616
        %v1745 = vtanh.pop %v1617
        %v1746 = vtanh.pop %v1618
        %v1747 = vtanh.pop %v1619
        %v1748 = vtanh.pop %v1620
        %v1749 = vtanh.pop %v1621
        %v1750 = vtanh.pop %v1622
        %v1751 = vtanh.pop %v1623
        %v1752 = vtanh.pop %v1624
        %v1753 = vtanh.pop %v1625
        %v1754 = vtanh.pop %v1626
        %v1755 = vtanh.pop %v1627
        %v1756 = vtanh.pop %v1628
        %v1757 = vtanh.pop %v1629
        %v1758 = vtanh.pop %v1630
        %v1759 = vtanh.pop %v1631
        %v1760 = vtanh.pop %v1632
        %v1761 = vtanh.pop %v1633
        %v1762 = vtanh.pop %v1634
        %v1763 = vtanh.pop %v1635
        %v1764 = vtanh.pop %v1636
        %v1765 = vtanh.pop %v1637
        %v1766 = vtanh.pop %v1638
        %v1767 = vtanh.pop %v1639
        %v1768 = vtanh.pop %v1640
        %v1769 = vtanh.pop %v1641
        %v1770 = vtanh.pop %v1642
        %v1771 = vtanh.pop %v1643
        %v1772 = vtanh.pop %v1644
        %v1773 = vtanh.pop %v1645
        %v1774 = vtanh.pop %v1646
        %v1775 = vtanh.pop %v1647
        %v1776 = vtanh.pop %v1648
        %v1777 = vtanh.pop %v1649
        %v1778 = vtanh.pop %v1650
        %v1779 = vtanh.pop %v1651
        %v1780 = vtanh.pop %v1652
        %v1781 = vtanh.pop %v1653
        %v1782 = vtanh.pop %v1654
        %v1783 = vtanh.pop %v1655
        %v1784 = vtanh.pop %v1656
        %v1785 = vtanh.pop %v1657
        %v1786 = vtanh.pop %v1658
        %v1787 = vtanh.pop %v1659
        %v1788 = vtanh.pop %v1660
        %v1789 = vtanh.pop %v1661
        %v1790 = vtanh.pop %v1662
        %v1791 = vtanh.pop %v1663
        %v1792 = vtanh.pop %v1664
        %v1793 = vtanh.pop %v1665
        %v1794 = vtanh.pop %v1666
        %v1795 = vtanh.pop %v1667
        %v1796 = vtanh.pop %v1668
        %v1797 = vtanh.pop %v1669
        %v1798 = vtanh.pop %v1670
        %v1799 = vtanh.pop %v1671
        %v1800 = vtanh.pop %v1672
        %v1801 = vtanh.pop %v1673
        %v1802 = vtanh.pop %v1674
        %v1803 = vtanh.pop %v1675
        %v1804 = vtanh.pop %v1676
        %v1805 = vtanh.pop %v1677
        %v1806 = vtanh.pop %v1678
        %v1807 = vtanh.pop %v1679
        %v1808 = vtanh.pop %v1680
        %v1809 = vtanh.pop %v1681
        %v1810 = vtanh.pop %v1682
        %v1811 = vtanh.pop %v1683
        %v1812 = vtanh.pop %v1684
        %v1813 = vtanh.pop %v1685
        %v1814 = vtanh.pop %v1686
        %v1815 = vtanh.pop %v1687
        %v1816 = vtanh.pop %v1688
        %v1817 = vtanh.pop %v1689
        %v1818 = vtanh.pop %v1690
        %v1819 = vtanh.pop %v1691
        %v1820 = vtanh.pop %v1692
        %v1821 = vtanh.pop %v1693
        %v1822 = vtanh.pop %v1694
        %v1823 = vtanh.pop %v1695
        %v1824 = vtanh.pop %v1696
        %v1825 = vtanh.pop %v1697
        %v1826 = vtanh.pop %v1698
        %v1827 = vtanh.pop %v1699
        %v1828 = vtanh.pop %v1700
        %v1829 = vtanh.pop %v1701
        %v1830 = vtanh.pop %v1702
        %v1831 = vtanh.pop %v1703
        %v1832 = vtanh.pop %v1704
        %v1833 = vtanh.pop %v1705
        %v1834 = vtanh.pop %v1706
        %v1835 = vtanh.pop %v1707
        %v1836 = vtanh.pop %v1708
        %v1837 = vtanh.pop %v1709
        %v1838 = vtanh.pop %v1710
        %v1839 = vtanh.pop %v1711
        %v1840 = vtanh.pop %v1712
        %v1841 = vtanh.pop %v1713
        %v1842 = vtanh.pop %v1714
        %v1843 = vtanh.pop %v1715
        %v1844 = vtanh.pop %v1716
        %v1845 = vtanh.pop %v1717
        %v1846 = vtanh.pop %v1718
        %v1847 = vtanh.pop %v1719
        %v1848 = vtanh.pop %v1720
        %v1849 = vtanh.pop %v1721
        %v1850 = vtanh.pop %v1722
        %v1851 = vtanh.pop %v1723
        %v1852 = vtanh.pop %v1724
        %v1853 = vtanh.pop %v1725
        %v1854 = vtanh.pop %v1726
        %v1855 = vtanh.pop %v1727
        %v1856 = vadd.f32 %v1728, 1.0
        %v1857 = vadd.f32 %v1729, 1.0
        %v1858 = vadd.f32 %v1730, 1.0
        %v1859 = vadd.f32 %v1731, 1.0
        %v1860 = vadd.f32 %v1732, 1.0
        %v1861 = vadd.f32 %v1733, 1.0
        %v1862 = vadd.f32 %v1734, 1.0
        %v1863 = vadd.f32 %v1735, 1.0
        %v1864 = vadd.f32 %v1736, 1.0
        %v1865 = vadd.f32 %v1737, 1.0
        %v1866 = vadd.f32 %v1738, 1.0
        %v1867 = vadd.f32 %v1739, 1.0
        %v1868 = vadd.f32 %v1740, 1.0
        %v1869 = vadd.f32 %v1741, 1.0
        %v1870 = vadd.f32 %v1742, 1.0
        %v1871 = vadd.f32 %v1743, 1.0
        %v1872 = vadd.f32 %v1744, 1.0
        %v1873 = vadd.f32 %v1745, 1.0
        %v1874 = vadd.f32 %v1746, 1.0
        %v1875 = vadd.f32 %v1747, 1.0
        %v1876 = vadd.f32 %v1748, 1.0
        %v1877 = vadd.f32 %v1749, 1.0
        %v1878 = vadd.f32 %v1750, 1.0
        %v1879 = vadd.f32 %v1751, 1.0
        %v1880 = vadd.f32 %v1752, 1.0
        %v1881 = vadd.f32 %v1753, 1.0
        %v1882 = vadd.f32 %v1754, 1.0
        %v1883 = vadd.f32 %v1755, 1.0
        %v1884 = vadd.f32 %v1756, 1.0
        %v1885 = vadd.f32 %v1757, 1.0
        %v1886 = vadd.f32 %v1758, 1.0
        %v1887 = vadd.f32 %v1759, 1.0
        %v1888 = vadd.f32 %v1760, 1.0
        %v1889 = vadd.f32 %v1761, 1.0
        %v1890 = vadd.f32 %v1762, 1.0
        %v1891 = vadd.f32 %v1763, 1.0
        %v1892 = vadd.f32 %v1764, 1.0
        %v1893 = vadd.f32 %v1765, 1.0
        %v1894 = vadd.f32 %v1766, 1.0
        %v1895 = vadd.f32 %v1767, 1.0
        %v1896 = vadd.f32 %v1768, 1.0
        %v1897 = vadd.f32 %v1769, 1.0
        %v1898 = vadd.f32 %v1770, 1.0
        %v1899 = vadd.f32 %v1771, 1.0
        %v1900 = vadd.f32 %v1772, 1.0
        %v1901 = vadd.f32 %v1773, 1.0
        %v1902 = vadd.f32 %v1774, 1.0
        %v1903 = vadd.f32 %v1775, 1.0
        %v1904 = vadd.f32 %v1776, 1.0
        %v1905 = vadd.f32 %v1777, 1.0
        %v1906 = vadd.f32 %v1778, 1.0
        %v1907 = vadd.f32 %v1779, 1.0
        %v1908 = vadd.f32 %v1780, 1.0
        %v1909 = vadd.f32 %v1781, 1.0
        %v1910 = vadd.f32 %v1782, 1.0
        %v1911 = vadd.f32 %v1783, 1.0
        %v1912 = vadd.f32 %v1784, 1.0
        %v1913 = vadd.f32 %v1785, 1.0
        %v1914 = vadd.f32 %v1786, 1.0
        %v1915 = vadd.f32 %v1787, 1.0
        %v1916 = vadd.f32 %v1788, 1.0
        %v1917 = vadd.f32 %v1789, 1.0
        %v1918 = vadd.f32 %v1790, 1.0
        %v1919 = vadd.f32 %v1791, 1.0
        %v1920 = vadd.f32 %v1792, 1.0
        %v1921 = vadd.f32 %v1793, 1.0
        %v1922 = vadd.f32 %v1794, 1.0
        %v1923 = vadd.f32 %v1795, 1.0
        %v1924 = vadd.f32 %v1796, 1.0
        %v1925 = vadd.f32 %v1797, 1.0
        %v1926 = vadd.f32 %v1798, 1.0
        %v1927 = vadd.f32 %v1799, 1.0
        %v1928 = vadd.f32 %v1800, 1.0
        %v1929 = vadd.f32 %v1801, 1.0
        %v1930 = vadd.f32 %v1802, 1.0
        %v1931 = vadd.f32 %v1803, 1.0
        %v1932 = vadd.f32 %v1804, 1.0
        %v1933 = vadd.f32 %v1805, 1.0
        %v1934 = vadd.f32 %v1806, 1.0
        %v1935 = vadd.f32 %v1807, 1.0
        %v1936 = vadd.f32 %v1808, 1.0
        %v1937 = vadd.f32 %v1809, 1.0
        %v1938 = vadd.f32 %v1810, 1.0
        %v1939 = vadd.f32 %v1811, 1.0
        %v1940 = vadd.f32 %v1812, 1.0
        %v1941 = vadd.f32 %v1813, 1.0
        %v1942 = vadd.f32 %v1814, 1.0
        %v1943 = vadd.f32 %v1815, 1.0
        %v1944 = vadd.f32 %v1816, 1.0
        %v1945 = vadd.f32 %v1817, 1.0
        %v1946 = vadd.f32 %v1818, 1.0
        %v1947 = vadd.f32 %v1819, 1.0
        %v1948 = vadd.f32 %v1820, 1.0
        %v1949 = vadd.f32 %v1821, 1.0
        %v1950 = vadd.f32 %v1822, 1.0
        %v1951 = vadd.f32 %v1823, 1.0
        %v1952 = vadd.f32 %v1824, 1.0
        %v1953 = vadd.f32 %v1825, 1.0
        %v1954 = vadd.f32 %v1826, 1.0
        %v1955 = vadd.f32 %v1827, 1.0
        %v1956 = vadd.f32 %v1828, 1.0
        %v1957 = vadd.f32 %v1829, 1.0
        %v1958 = vadd.f32 %v1830, 1.0
        %v1959 = vadd.f32 %v1831, 1.0
        %v1960 = vadd.f32 %v1832, 1.0
        %v1961 = vadd.f32 %v1833, 1.0
        %v1962 = vadd.f32 %v1834, 1.0
        %v1963 = vadd.f32 %v1835, 1.0
        %v1964 = vadd.f32 %v1836, 1.0
        %v1965 = vadd.f32 %v1837, 1.0
        %v1966 = vadd.f32 %v1838, 1.0
        %v1967 = vadd.f32 %v1839, 1.0
        %v1968 = vadd.f32 %v1840, 1.0
        %v1969 = vadd.f32 %v1841, 1.0
        %v1970 = vadd.f32 %v1842, 1.0
        %v1971 = vadd.f32 %v1843, 1.0
        %v1972 = vadd.f32 %v1844, 1.0
        %v1973 = vadd.f32 %v1845, 1.0
        %v1974 = vadd.f32 %v1846, 1.0
        %v1975 = vadd.f32 %v1847, 1.0
        %v1976 = vadd.f32 %v1848, 1.0
        %v1977 = vadd.f32 %v1849, 1.0
        %v1978 = vadd.f32 %v1850, 1.0
        %v1979 = vadd.f32 %v1851, 1.0
        %v1980 = vadd.f32 %v1852, 1.0
        %v1981 = vadd.f32 %v1853, 1.0
        %v1982 = vadd.f32 %v1854, 1.0
        %v1983 = vadd.f32 %v1855, 1.0
        %v1984 = vmul.f32 %v1856, 0.5
        %v1985 = vmul.f32 %v1857, 0.5
        %v1986 = vmul.f32 %v1858, 0.5
        %v1987 = vmul.f32 %v1859, 0.5
        %v1988 = vmul.f32 %v1860, 0.5
        %v1989 = vmul.f32 %v1861, 0.5
        %v1990 = vmul.f32 %v1862, 0.5
        %v1991 = vmul.f32 %v1863, 0.5
        %v1992 = vmul.f32 %v1864, 0.5
        %v1993 = vmul.f32 %v1865, 0.5
        %v1994 = vmul.f32 %v1866, 0.5
        %v1995 = vmul.f32 %v1867, 0.5
        %v1996 = vmul.f32 %v1868, 0.5
        %v1997 = vmul.f32 %v1869, 0.5
        %v1998 = vmul.f32 %v1870, 0.5
        %v1999 = vmul.f32 %v1871, 0.5
        %v2000 = vmul.f32 %v1872, 0.5
        %v2001 = vmul.f32 %v1873, 0.5
        %v2002 = vmul.f32 %v1874, 0.5
        %v2003 = vmul.f32 %v1875, 0.5
        %v2004 = vmul.f32 %v1876, 0.5
        %v2005 = vmul.f32 %v1877, 0.5
        %v2006 = vmul.f32 %v1878, 0.5
        %v2007 = vmul.f32 %v1879, 0.5
        %v2008 = vmul.f32 %v1880, 0.5
        %v2009 = vmul.f32 %v1881, 0.5
        %v2010 = vmul.f32 %v1882, 0.5
        %v2011 = vmul.f32 %v1883, 0.5
        %v2012 = vmul.f32 %v1884, 0.5
        %v2013 = vmul.f32 %v1885, 0.5
        %v2014 = vmul.f32 %v1886, 0.5
        %v2015 = vmul.f32 %v1887, 0.5
        %v2016 = vmul.f32 %v1888, 0.5
        %v2017 = vmul.f32 %v1889, 0.5
        %v2018 = vmul.f32 %v1890, 0.5
        %v2019 = vmul.f32 %v1891, 0.5
        %v2020 = vmul.f32 %v1892, 0.5
        %v2021 = vmul.f32 %v1893, 0.5
        %v2022 = vmul.f32 %v1894, 0.5
        %v2023 = vmul.f32 %v1895, 0.5
        %v2024 = vmul.f32 %v1896, 0.5
        %v2025 = vmul.f32 %v1897, 0.5
        %v2026 = vmul.f32 %v1898, 0.5
        %v2027 = vmul.f32 %v1899, 0.5
        %v2028 = vmul.f32 %v1900, 0.5
        %v2029 = vmul.f32 %v1901, 0.5
        %v2030 = vmul.f32 %v1902, 0.5
        %v2031 = vmul.f32 %v1903, 0.5
        %v2032 = vmul.f32 %v1904, 0.5
        %v2033 = vmul.f32 %v1905, 0.5
        %v2034 = vmul.f32 %v1906, 0.5
        %v2035 = vmul.f32 %v1907, 0.5
        %v2036 = vmul.f32 %v1908, 0.5
        %v2037 = vmul.f32 %v1909, 0.5
        %v2038 = vmul.f32 %v1910, 0.5
        %v2039 = vmul.f32 %v1911, 0.5
        %v2040 = vmul.f32 %v1912, 0.5
        %v2041 = vmul.f32 %v1913, 0.5
        %v2042 = vmul.f32 %v1914, 0.5
        %v2043 = vmul.f32 %v1915, 0.5
        %v2044 = vmul.f32 %v1916, 0.5
        %v2045 = vmul.f32 %v1917, 0.5
        %v2046 = vmul.f32 %v1918, 0.5
        %v2047 = vmul.f32 %v1919, 0.5
        %v2048 = vmul.f32 %v1920, 0.5
        %v2049 = vmul.f32 %v1921, 0.5
        %v2050 = vmul.f32 %v1922, 0.5
        %v2051 = vmul.f32 %v1923, 0.5
        %v2052 = vmul.f32 %v1924, 0.5
        %v2053 = vmul.f32 %v1925, 0.5
        %v2054 = vmul.f32 %v1926, 0.5
        %v2055 = vmul.f32 %v1927, 0.5
        %v2056 = vmul.f32 %v1928, 0.5
        %v2057 = vmul.f32 %v1929, 0.5
        %v2058 = vmul.f32 %v1930, 0.5
        %v2059 = vmul.f32 %v1931, 0.5
        %v2060 = vmul.f32 %v1932, 0.5
        %v2061 = vmul.f32 %v1933, 0.5
        %v2062 = vmul.f32 %v1934, 0.5
        %v2063 = vmul.f32 %v1935, 0.5
        %v2064 = vmul.f32 %v1936, 0.5
        %v2065 = vmul.f32 %v1937, 0.5
        %v2066 = vmul.f32 %v1938, 0.5
        %v2067 = vmul.f32 %v1939, 0.5
        %v2068 = vmul.f32 %v1940, 0.5
        %v2069 = vmul.f32 %v1941, 0.5
        %v2070 = vmul.f32 %v1942, 0.5
        %v2071 = vmul.f32 %v1943, 0.5
        %v2072 = vmul.f32 %v1944, 0.5
        %v2073 = vmul.f32 %v1945, 0.5
        %v2074 = vmul.f32 %v1946, 0.5
        %v2075 = vmul.f32 %v1947, 0.5
        %v2076 = vmul.f32 %v1948, 0.5
        %v2077 = vmul.f32 %v1949, 0.5
        %v2078 = vmul.f32 %v1950, 0.5
        %v2079 = vmul.f32 %v1951, 0.5
        %v2080 = vmul.f32 %v1952, 0.5
        %v2081 = vmul.f32 %v1953, 0.5
        %v2082 = vmul.f32 %v1954, 0.5
        %v2083 = vmul.f32 %v1955, 0.5
        %v2084 = vmul.f32 %v1956, 0.5
        %v2085 = vmul.f32 %v1957, 0.5
        %v2086 = vmul.f32 %v1958, 0.5
        %v2087 = vmul.f32 %v1959, 0.5
        %v2088 = vmul.f32 %v1960, 0.5
        %v2089 = vmul.f32 %v1961, 0.5
        %v2090 = vmul.f32 %v1962, 0.5
        %v2091 = vmul.f32 %v1963, 0.5
        %v2092 = vmul.f32 %v1964, 0.5
        %v2093 = vmul.f32 %v1965, 0.5
        %v2094 = vmul.f32 %v1966, 0.5
        %v2095 = vmul.f32 %v1967, 0.5
        %v2096 = vmul.f32 %v1968, 0.5
        %v2097 = vmul.f32 %v1969, 0.5
        %v2098 = vmul.f32 %v1970, 0.5
        %v2099 = vmul.f32 %v1971, 0.5
        %v2100 = vmul.f32 %v1972, 0.5
        %v2101 = vmul.f32 %v1973, 0.5
        %v2102 = vmul.f32 %v1974, 0.5
        %v2103 = vmul.f32 %v1975, 0.5
        %v2104 = vmul.f32 %v1976, 0.5
        %v2105 = vmul.f32 %v1977, 0.5
        %v2106 = vmul.f32 %v1978, 0.5
        %v2107 = vmul.f32 %v1979, 0.5
        %v2108 = vmul.f32 %v1980, 0.5
        %v2109 = vmul.f32 %v1981, 0.5
        %v2110 = vmul.f32 %v1982, 0.5
        %v2111 = vmul.f32 %v1983, 0.5
        %v2112 = vmul.f32 %v737, %v1984
        %v2113 = vmul.f32 %v739, %v1985
        %v2114 = vmul.f32 %v930, %v1986
        %v2115 = vmul.f32 %v932, %v1987
        %v2116 = vmul.f32 %v741, %v1988
        %v2117 = vmul.f32 %v743, %v1989
        %v2118 = vmul.f32 %v934, %v1990
        %v2119 = vmul.f32 %v936, %v1991
        %v2120 = vmul.f32 %v747, %v1992
        %v2121 = vmul.f32 %v749, %v1993
        %v2122 = vmul.f32 %v940, %v1994
        %v2123 = vmul.f32 %v942, %v1995
        %v2124 = vmul.f32 %v751, %v1996
        %v2125 = vmul.f32 %v753, %v1997
        %v2126 = vmul.f32 %v944, %v1998
        %v2127 = vmul.f32 %v946, %v1999
        %v2128 = vmul.f32 %v757, %v2000
        %v2129 = vmul.f32 %v759, %v2001
        %v2130 = vmul.f32 %v950, %v2002
        %v2131 = vmul.f32 %v952, %v2003
        %v2132 = vmul.f32 %v761, %v2004
        %v2133 = vmul.f32 %v763, %v2005
        %v2134 = vmul.f32 %v954, %v2006
        %v2135 = vmul.f32 %v956, %v2007
        %v2136 = vmul.f32 %v767, %v2008
        %v2137 = vmul.f32 %v769, %v2009
        %v2138 = vmul.f32 %v960, %v2010
        %v2139 = vmul.f32 %v962, %v2011
        %v2140 = vmul.f32 %v771, %v2012
        %v2141 = vmul.f32 %v773, %v2013
        %v2142 = vmul.f32 %v964, %v2014
        %v2143 = vmul.f32 %v966, %v2015
        %v2144 = vmul.f32 %v777, %v2016
        %v2145 = vmul.f32 %v779, %v2017
        %v2146 = vmul.f32 %v970, %v2018
        %v2147 = vmul.f32 %v972, %v2019
        %v2148 = vmul.f32 %v781, %v2020
        %v2149 = vmul.f32 %v783, %v2021
        %v2150 = vmul.f32 %v974, %v2022
        %v2151 = vmul.f32 %v976, %v2023
        %v2152 = vmul.f32 %v787, %v2024
        %v2153 = vmul.f32 %v789, %v2025
        %v2154 = vmul.f32 %v980, %v2026
        %v2155 = vmul.f32 %v982, %v2027
        %v2156 = vmul.f32 %v791, %v2028
        %v2157 = vmul.f32 %v793, %v2029
        %v2158 = vmul.f32 %v984, %v2030
        %v2159 = vmul.f32 %v986, %v2031
        %v2160 = vmul.f32 %v797, %v2032
        %v2161 = vmul.f32 %v799, %v2033
        %v2162 = vmul.f32 %v990, %v2034
        %v2163 = vmul.f32 %v992, %v2035
        %v2164 = vmul.f32 %v801, %v2036
        %v2165 = vmul.f32 %v803, %v2037
        %v2166 = vmul.f32 %v994, %v2038
        %v2167 = vmul.f32 %v996, %v2039
        %v2168 = vmul.f32 %v807, %v2040
        %v2169 = vmul.f32 %v809, %v2041
        %v2170 = vmul.f32 %v1000, %v2042
        %v2171 = vmul.f32 %v1002, %v2043
        %v2172 = vmul.f32 %v811, %v2044
        %v2173 = vmul.f32 %v813, %v2045
        %v2174 = vmul.f32 %v1004, %v2046
        %v2175 = vmul.f32 %v1006, %v2047
        %v2176 = vmul.f32 %v817, %v2048
        %v2177 = vmul.f32 %v819, %v2049
        %v2178 = vmul.f32 %v1010, %v2050
        %v2179 = vmul.f32 %v1012, %v2051
        %v2180 = vmul.f32 %v821, %v2052
        %v2181 = vmul.f32 %v823, %v2053
        %v2182 = vmul.f32 %v1014, %v2054
        %v2183 = vmul.f32 %v1016, %v2055
        %v2184 = vmul.f32 %v827, %v2056
        %v2185 = vmul.f32 %v829, %v2057
        %v2186 = vmul.f32 %v1020, %v2058
        %v2187 = vmul.f32 %v1022, %v2059
        %v2188 = vmul.f32 %v831, %v2060
        %v2189 = vmul.f32 %v833, %v2061
        %v2190 = vmul.f32 %v1024, %v2062
        %v2191 = vmul.f32 %v1026, %v2063
        %v2192 = vmul.f32 %v837, %v2064
        %v2193 = vmul.f32 %v839, %v2065
        %v2194 = vmul.f32 %v1030, %v2066
        %v2195 = vmul.f32 %v1032, %v2067
        %v2196 = vmul.f32 %v841, %v2068
        %v2197 = vmul.f32 %v843, %v2069
        %v2198 = vmul.f32 %v1034, %v2070
        %v2199 = vmul.f32 %v1036, %v2071
        %v2200 = vmul.f32 %v847, %v2072
        %v2201 = vmul.f32 %v849, %v2073
        %v2202 = vmul.f32 %v1040, %v2074
        %v2203 = vmul.f32 %v1042, %v2075
        %v2204 = vmul.f32 %v851, %v2076
        %v2205 = vmul.f32 %v853, %v2077
        %v2206 = vmul.f32 %v1044, %v2078
        %v2207 = vmul.f32 %v1046, %v2079
        %v2208 = vmul.f32 %v857, %v2080
        %v2209 = vmul.f32 %v859, %v2081
        %v2210 = vmul.f32 %v1050, %v2082
        %v2211 = vmul.f32 %v1052, %v2083
        %v2212 = vmul.f32 %v861, %v2084
        %v2213 = vmul.f32 %v863, %v2085
        %v2214 = vmul.f32 %v1054, %v2086
        %v2215 = vmul.f32 %v1056, %v2087
        %v2216 = vmul.f32 %v867, %v2088
        %v2217 = vmul.f32 %v869, %v2089
        %v2218 = vmul.f32 %v1060, %v2090
        %v2219 = vmul.f32 %v1062, %v2091
        %v2220 = vmul.f32 %v871, %v2092
        %v2221 = vmul.f32 %v873, %v2093
        %v2222 = vmul.f32 %v1064, %v2094
        %v2223 = vmul.f32 %v1066, %v2095
        %v2224 = vmul.f32 %v877, %v2096
        %v2225 = vmul.f32 %v879, %v2097
        %v2226 = vmul.f32 %v1070, %v2098
        %v2227 = vmul.f32 %v1072, %v2099
        %v2228 = vmul.f32 %v881, %v2100
        %v2229 = vmul.f32 %v883, %v2101
        %v2230 = vmul.f32 %v1074, %v2102
        %v2231 = vmul.f32 %v1076, %v2103
        %v2232 = vmul.f32 %v887, %v2104
        %v2233 = vmul.f32 %v889, %v2105
        %v2234 = vmul.f32 %v1080, %v2106
        %v2235 = vmul.f32 %v1082, %v2107
        %v2236 = vmul.f32 %v891, %v2108
        %v2237 = vmul.f32 %v893, %v2109
        %v2238 = vmul.f32 %v1084, %v2110
        %v2239 = vmul.f32 %v1086, %v2111
        %v2240 = vpack.c.bf16 %v2116, %v2112
        %v2241 = vpack.c.bf16 %v2117, %v2113
        %v2242 = vpack.c.bf16 %v2118, %v2114
        %v2243 = vpack.c.bf16 %v2119, %v2115
        %v2244 = vpack.c.bf16 %v2124, %v2120
        %v2245 = vpack.c.bf16 %v2125, %v2121
        %v2246 = vpack.c.bf16 %v2126, %v2122
        %v2247 = vpack.c.bf16 %v2127, %v2123
        %v2248 = vpack.c.bf16 %v2132, %v2128
        %v2249 = vpack.c.bf16 %v2133, %v2129
        %v2250 = vpack.c.bf16 %v2134, %v2130
        %v2251 = vpack.c.bf16 %v2135, %v2131
        %v2252 = vpack.c.bf16 %v2140, %v2136
        %v2253 = vpack.c.bf16 %v2141, %v2137
        %v2254 = vpack.c.bf16 %v2142, %v2138
        %v2255 = vpack.c.bf16 %v2143, %v2139
        %v2256 = vpack.c.bf16 %v2148, %v2144
        %v2257 = vpack.c.bf16 %v2149, %v2145
        %v2258 = vpack.c.bf16 %v2150, %v2146
        %v2259 = vpack.c.bf16 %v2151, %v2147
        %v2260 = vpack.c.bf16 %v2156, %v2152
        %v2261 = vpack.c.bf16 %v2157, %v2153
        %v2262 = vpack.c.bf16 %v2158, %v2154
        %v2263 = vpack.c.bf16 %v2159, %v2155
        %v2264 = vpack.c.bf16 %v2164, %v2160
        %v2265 = vpack.c.bf16 %v2165, %v2161
        %v2266 = vpack.c.bf16 %v2166, %v2162
        %v2267 = vpack.c.bf16 %v2167, %v2163
        %v2268 = vpack.c.bf16 %v2172, %v2168
        %v2269 = vpack.c.bf16 %v2173, %v2169
        %v2270 = vpack.c.bf16 %v2174, %v2170
        %v2271 = vpack.c.bf16 %v2175, %v2171
        %v2272 = vpack.c.bf16 %v2180, %v2176
        %v2273 = vpack.c.bf16 %v2181, %v2177
        %v2274 = vpack.c.bf16 %v2182, %v2178
        %v2275 = vpack.c.bf16 %v2183, %v2179
        %v2276 = vpack.c.bf16 %v2188, %v2184
        %v2277 = vpack.c.bf16 %v2189, %v2185
        %v2278 = vpack.c.bf16 %v2190, %v2186
        %v2279 = vpack.c.bf16 %v2191, %v2187
        %v2280 = vpack.c.bf16 %v2196, %v2192
        %v2281 = vpack.c.bf16 %v2197, %v2193
        %v2282 = vpack.c.bf16 %v2198, %v2194
        %v2283 = vpack.c.bf16 %v2199, %v2195
        %v2284 = vpack.c.bf16 %v2204, %v2200
        %v2285 = vpack.c.bf16 %v2205, %v2201
        %v2286 = vpack.c.bf16 %v2206, %v2202
        %v2287 = vpack.c.bf16 %v2207, %v2203
        %v2288 = vpack.c.bf16 %v2212, %v2208
        %v2289 = vpack.c.bf16 %v2213, %v2209
        %v2290 = vpack.c.bf16 %v2214, %v2210
        %v2291 = vpack.c.bf16 %v2215, %v2211
        %v2292 = vpack.c.bf16 %v2220, %v2216
        %v2293 = vpack.c.bf16 %v2221, %v2217
        %v2294 = vpack.c.bf16 %v2222, %v2218
        %v2295 = vpack.c.bf16 %v2223, %v2219
        %v2296 = vpack.c.bf16 %v2228, %v2224
        %v2297 = vpack.c.bf16 %v2229, %v2225
        %v2298 = vpack.c.bf16 %v2230, %v2226
        %v2299 = vpack.c.bf16 %v2231, %v2227
        %v2300 = vpack.c.bf16 %v2236, %v2232
        %v2301 = vpack.c.bf16 %v2237, %v2233
        %v2302 = vpack.c.bf16 %v2238, %v2234
        %v2303 = vpack.c.bf16 %v2239, %v2235
        %v2304 = vld [vmem:[#allocation2] sm:$0xff]
        %v2305 = vld [vmem:[#allocation2 + $0x8] sm:$0xff]
        %v2306 = vld [vmem:[#allocation2 + $0x10] sm:$0xff]
        %v2307 = vld [vmem:[#allocation2 + $0x18] sm:$0xff]
        %v2308 = vld [vmem:[#allocation2 + $0x20] sm:$0xff]
        %v2309 = vld [vmem:[#allocation2 + $0x28] sm:$0xff]
        %v2310 = vld [vmem:[#allocation2 + $0x30] sm:$0xff]
        %v2311 = vld [vmem:[#allocation2 + $0x38] sm:$0xff]
        %v2312 = vld [vmem:[#allocation2 + $0x40] sm:$0xff]
        %v2313 = vld [vmem:[#allocation2 + $0x48] sm:$0xff]
        %v2314 = vld [vmem:[#allocation2 + $0x50] sm:$0xff]
        %v2315 = vld [vmem:[#allocation2 + $0x58] sm:$0xff]
        %v2316 = vld [vmem:[#allocation2 + $0x60] sm:$0xff]
        %v2317 = vld [vmem:[#allocation2 + $0x68] sm:$0xff]
        %v2318 = vld [vmem:[#allocation2 + $0x70] sm:$0xff]
        %v2319 = vld [vmem:[#allocation2 + $0x78] sm:$0xff]
        %v2320 = vld [vmem:[#allocation2 + $0x80] sm:$0xff]
        %v2321 = vld [vmem:[#allocation2 + $0x88] sm:$0xff]
        %v2322 = vld [vmem:[#allocation2 + $0x90] sm:$0xff]
        %v2323 = vld [vmem:[#allocation2 + $0x98] sm:$0xff]
        %v2324 = vld [vmem:[#allocation2 + $0xa0] sm:$0xff]
        %v2325 = vld [vmem:[#allocation2 + $0xa8] sm:$0xff]
        %v2326 = vld [vmem:[#allocation2 + $0xb0] sm:$0xff]
        %v2327 = vld [vmem:[#allocation2 + $0xb8] sm:$0xff]
        %v2328 = vld [vmem:[#allocation2 + $0xc0] sm:$0xff]
        %v2329 = vld [vmem:[#allocation2 + $0xc8] sm:$0xff]
        %v2330 = vld [vmem:[#allocation2 + $0xd0] sm:$0xff]
        %v2331 = vld [vmem:[#allocation2 + $0xd8] sm:$0xff]
        %v2332 = vld [vmem:[#allocation2 + $0xe0] sm:$0xff]
        %v2333 = vld [vmem:[#allocation2 + $0xe8] sm:$0xff]
        %v2334 = vld [vmem:[#allocation2 + $0xf0] sm:$0xff]
        %v2335 = vld [vmem:[#allocation2 + $0xf8] sm:$0xff]
        %v2336 = vld [vmem:[#allocation8] sm:$0xf]
        %v2337 = vld [vmem:[#allocation8 + $0x4] sm:$0xf]
        %v2338 = vld [vmem:[#allocation8 + $0x8] sm:$0xf]
        %v2339 = vld [vmem:[#allocation8 + $0xc] sm:$0xf]
        %v2340 = vld [vmem:[#allocation8 + $0x10] sm:$0xf]
        %v2341 = vld [vmem:[#allocation8 + $0x14] sm:$0xf]
        %v2342 = vld [vmem:[#allocation8 + $0x18] sm:$0xf]
        %v2343 = vld [vmem:[#allocation8 + $0x1c] sm:$0xf]
        %v2344 = vld [vmem:[#allocation8 + $0x20] sm:$0xf]
        %v2345 = vld [vmem:[#allocation8 + $0x24] sm:$0xf]
        %v2346 = vld [vmem:[#allocation8 + $0x28] sm:$0xf]
        %v2347 = vld [vmem:[#allocation8 + $0x2c] sm:$0xf]
        %v2348 = vld [vmem:[#allocation8 + $0x30] sm:$0xf]
        %v2349 = vld [vmem:[#allocation8 + $0x34] sm:$0xf]
        %v2350 = vld [vmem:[#allocation8 + $0x38] sm:$0xf]
        %v2351 = vld [vmem:[#allocation8 + $0x3c] sm:$0xf]
        %v2352 = vld [vmem:[#allocation8 + $0x40] sm:$0xf]
        %v2353 = vld [vmem:[#allocation8 + $0x44] sm:$0xf]
        %v2354 = vld [vmem:[#allocation8 + $0x48] sm:$0xf]
        %v2355 = vld [vmem:[#allocation8 + $0x4c] sm:$0xf]
        %v2356 = vld [vmem:[#allocation8 + $0x50] sm:$0xf]
        %v2357 = vld [vmem:[#allocation8 + $0x54] sm:$0xf]
        %v2358 = vld [vmem:[#allocation8 + $0x58] sm:$0xf]
        %v2359 = vld [vmem:[#allocation8 + $0x5c] sm:$0xf]
        %v2360 = vld [vmem:[#allocation8 + $0x60] sm:$0xf]
        %v2361 = vld [vmem:[#allocation8 + $0x64] sm:$0xf]
        %v2362 = vld [vmem:[#allocation8 + $0x68] sm:$0xf]
        %v2363 = vld [vmem:[#allocation8 + $0x6c] sm:$0xf]
        %v2364 = vld [vmem:[#allocation8 + $0x70] sm:$0xf]
        %v2365 = vld [vmem:[#allocation8 + $0x74] sm:$0xf]
        %v2366 = vld [vmem:[#allocation8 + $0x78] sm:$0xf]
        %v2367 = vld [vmem:[#allocation8 + $0x7c] sm:$0xf]
        %v2368 = vld [vmem:[#allocation8 + $0x80] sm:$0xf]
        %v2369 = vld [vmem:[#allocation8 + $0x84] sm:$0xf]
        %v2370 = vld [vmem:[#allocation8 + $0x88] sm:$0xf]
        %v2371 = vld [vmem:[#allocation8 + $0x8c] sm:$0xf]
        %v2372 = vld [vmem:[#allocation8 + $0x90] sm:$0xf]
        %v2373 = vld [vmem:[#allocation8 + $0x94] sm:$0xf]
        %v2374 = vld [vmem:[#allocation8 + $0x98] sm:$0xf]
        %v2375 = vld [vmem:[#allocation8 + $0x9c] sm:$0xf]
        %v2376 = vld [vmem:[#allocation8 + $0xa0] sm:$0xf]
        %v2377 = vld [vmem:[#allocation8 + $0xa4] sm:$0xf]
        %v2378 = vld [vmem:[#allocation8 + $0xa8] sm:$0xf]
        %v2379 = vld [vmem:[#allocation8 + $0xac] sm:$0xf]
        %v2380 = vld [vmem:[#allocation8 + $0xb0] sm:$0xf]
        %v2381 = vld [vmem:[#allocation8 + $0xb4] sm:$0xf]
        %v2382 = vld [vmem:[#allocation8 + $0xb8] sm:$0xf]
        %v2383 = vld [vmem:[#allocation8 + $0xbc] sm:$0xf]
        %v2384 = vld [vmem:[#allocation8 + $0xc0] sm:$0xf]
        %v2385 = vld [vmem:[#allocation8 + $0xc4] sm:$0xf]
        %v2386 = vld [vmem:[#allocation8 + $0xc8] sm:$0xf]
        %v2387 = vld [vmem:[#allocation8 + $0xcc] sm:$0xf]
        %v2388 = vld [vmem:[#allocation8 + $0xd0] sm:$0xf]
        %v2389 = vld [vmem:[#allocation8 + $0xd4] sm:$0xf]
        %v2390 = vld [vmem:[#allocation8 + $0xd8] sm:$0xf]
        %v2391 = vld [vmem:[#allocation8 + $0xdc] sm:$0xf]
        %v2392 = vld [vmem:[#allocation8 + $0xe0] sm:$0xf]
        %v2393 = vld [vmem:[#allocation8 + $0xe4] sm:$0xf]
        %v2394 = vld [vmem:[#allocation8 + $0xe8] sm:$0xf]
        %v2395 = vld [vmem:[#allocation8 + $0xec] sm:$0xf]
        %v2396 = vld [vmem:[#allocation8 + $0xf0] sm:$0xf]
        %v2397 = vld [vmem:[#allocation8 + $0xf4] sm:$0xf]
        %v2398 = vld [vmem:[#allocation8 + $0xf8] sm:$0xf]
        %v2399 = vld [vmem:[#allocation8 + $0xfc] sm:$0xf]
        %v2464 = vunpack.c.l.b16 %v2336
        %v2465 = vunpack.c.l.b16 %v2337
        %v2466 = vunpack.c.l.b16 %v2338
        %v2467 = vunpack.c.l.b16 %v2339
        %v2468 = vunpack.c.l.b16 %v2340
        %v2469 = vunpack.c.l.b16 %v2341
        %v2470 = vunpack.c.l.b16 %v2342
        %v2471 = vunpack.c.l.b16 %v2343
        %v2472 = vunpack.c.l.b16 %v2344
        %v2473 = vunpack.c.l.b16 %v2345
        %v2474 = vunpack.c.l.b16 %v2346
        %v2475 = vunpack.c.l.b16 %v2347
        %v2476 = vunpack.c.l.b16 %v2348
        %v2477 = vunpack.c.l.b16 %v2349
        %v2478 = vunpack.c.l.b16 %v2350
        %v2479 = vunpack.c.l.b16 %v2351
        %v2480 = vunpack.c.l.b16 %v2352
        %v2481 = vunpack.c.l.b16 %v2353
        %v2482 = vunpack.c.l.b16 %v2354
        %v2483 = vunpack.c.l.b16 %v2355
        %v2484 = vunpack.c.l.b16 %v2356
        %v2485 = vunpack.c.l.b16 %v2357
        %v2486 = vunpack.c.l.b16 %v2358
        %v2487 = vunpack.c.l.b16 %v2359
        %v2488 = vunpack.c.l.b16 %v2360
        %v2489 = vunpack.c.l.b16 %v2361
        %v2490 = vunpack.c.l.b16 %v2362
        %v2491 = vunpack.c.l.b16 %v2363
        %v2492 = vunpack.c.l.b16 %v2364
        %v2493 = vunpack.c.l.b16 %v2365
        %v2494 = vunpack.c.l.b16 %v2366
        %v2495 = vunpack.c.l.b16 %v2367
        %v2496 = vunpack.c.l.b16 %v2368
        %v2497 = vunpack.c.l.b16 %v2369
        %v2498 = vunpack.c.l.b16 %v2370
        %v2499 = vunpack.c.l.b16 %v2371
        %v2500 = vunpack.c.l.b16 %v2372
        %v2501 = vunpack.c.l.b16 %v2373
        %v2502 = vunpack.c.l.b16 %v2374
        %v2503 = vunpack.c.l.b16 %v2375
        %v2504 = vunpack.c.l.b16 %v2376
        %v2505 = vunpack.c.l.b16 %v2377
        %v2506 = vunpack.c.l.b16 %v2378
        %v2507 = vunpack.c.l.b16 %v2379
        %v2508 = vunpack.c.l.b16 %v2380
        %v2509 = vunpack.c.l.b16 %v2381
        %v2510 = vunpack.c.l.b16 %v2382
        %v2511 = vunpack.c.l.b16 %v2383
        %v2512 = vunpack.c.l.b16 %v2384
        %v2513 = vunpack.c.l.b16 %v2385
        %v2514 = vunpack.c.l.b16 %v2386
        %v2515 = vunpack.c.l.b16 %v2387
        %v2516 = vunpack.c.l.b16 %v2388
        %v2517 = vunpack.c.l.b16 %v2389
        %v2518 = vunpack.c.l.b16 %v2390
        %v2519 = vunpack.c.l.b16 %v2391
        %v2520 = vunpack.c.l.b16 %v2392
        %v2521 = vunpack.c.l.b16 %v2393
        %v2522 = vunpack.c.l.b16 %v2394
        %v2523 = vunpack.c.l.b16 %v2395
        %v2524 = vunpack.c.l.b16 %v2396
        %v2525 = vunpack.c.l.b16 %v2397
        %v2526 = vunpack.c.l.b16 %v2398
        %v2527 = vunpack.c.l.b16 %v2399
        %v2528 = vpack.c.b16 %v2465, %v2464
        %v2529 = vpack.c.b16 %v2467, %v2466
        %v2530 = vpack.c.b16 %v2469, %v2468
        %v2531 = vpack.c.b16 %v2471, %v2470
        %v2532 = vpack.c.b16 %v2473, %v2472
        %v2533 = vpack.c.b16 %v2475, %v2474
        %v2534 = vpack.c.b16 %v2477, %v2476
        %v2535 = vpack.c.b16 %v2479, %v2478
        %v2536 = vpack.c.b16 %v2481, %v2480
        %v2537 = vpack.c.b16 %v2483, %v2482
        %v2538 = vpack.c.b16 %v2485, %v2484
        %v2539 = vpack.c.b16 %v2487, %v2486
        %v2540 = vpack.c.b16 %v2489, %v2488
        %v2541 = vpack.c.b16 %v2491, %v2490
        %v2542 = vpack.c.b16 %v2493, %v2492
        %v2543 = vpack.c.b16 %v2495, %v2494
        %v2544 = vpack.c.b16 %v2497, %v2496
        %v2545 = vpack.c.b16 %v2499, %v2498
        %v2546 = vpack.c.b16 %v2501, %v2500
        %v2547 = vpack.c.b16 %v2503, %v2502
        %v2548 = vpack.c.b16 %v2505, %v2504
        %v2549 = vpack.c.b16 %v2507, %v2506
        %v2550 = vpack.c.b16 %v2509, %v2508
        %v2551 = vpack.c.b16 %v2511, %v2510
        %v2552 = vpack.c.b16 %v2513, %v2512
        %v2553 = vpack.c.b16 %v2515, %v2514
        %v2554 = vpack.c.b16 %v2517, %v2516
        %v2555 = vpack.c.b16 %v2519, %v2518
        %v2556 = vpack.c.b16 %v2521, %v2520
        %v2557 = vpack.c.b16 %v2523, %v2522
        %v2558 = vpack.c.b16 %v2525, %v2524
        %v2559 = vpack.c.b16 %v2527, %v2526
        %2592 = vmatprep.subr.bf16.mxu0 0
        %2593 = vmatpush1.bf16.msra.mxu0 %v2528
        %2594 = vmatprep.subr.bf16.mxu0 0
        %2595 = vmatpush1.bf16.msra.mxu0 %v2529
        %2596 = vmatprep.subr.bf16.mxu0 0
        %2597 = vmatpush1.bf16.msra.mxu0 %v2530
        %2598 = vmatprep.subr.bf16.mxu0 0
        %2599 = vmatpush1.bf16.msra.mxu0 %v2531
        %2600 = vmatprep.subr.bf16.mxu0 0
        %2601 = vmatpush1.bf16.msra.mxu0 %v2532
        %2602 = vmatprep.subr.bf16.mxu0 0
        %2603 = vmatpush1.bf16.msra.mxu0 %v2533
        %2604 = vmatprep.subr.bf16.mxu0 0
        %2605 = vmatpush1.bf16.msra.mxu0 %v2534
        %2606 = vmatprep.subr.bf16.mxu0 0
        %2607 = vmatpush1.bf16.msra.mxu0 %v2535
        %2608 = vmatprep.subr.bf16.mxu0 0
        %2609 = vmatpush1.bf16.msra.mxu0 %v2536
        %2610 = vmatprep.subr.bf16.mxu0 0
        %2611 = vmatpush1.bf16.msra.mxu0 %v2537
        %2612 = vmatprep.subr.bf16.mxu0 0
        %2613 = vmatpush1.bf16.msra.mxu0 %v2538
        %2614 = vmatprep.subr.bf16.mxu0 0
        %2615 = vmatpush1.bf16.msra.mxu0 %v2539
        %2616 = vmatprep.subr.bf16.mxu0 0
        %2617 = vmatpush1.bf16.msra.mxu0 %v2540
        %2618 = vmatprep.subr.bf16.mxu0 0
        %2619 = vmatpush1.bf16.msra.mxu0 %v2541
        %2620 = vmatprep.subr.bf16.mxu0 0
        %2621 = vmatpush1.bf16.msra.mxu0 %v2542
        %2622 = vmatprep.subr.bf16.mxu0 0
        %2623 = vmatpush1.bf16.msra.mxu0 %v2543
        %2624 = vmatprep.mubr.bf16.mxu0 %v2241
        %2625 = vmatmul.mubr.bf16.gmra.mrb[0].mxu0 %v2240
        %v2626 = vpop.f32.mrb[0].mxu0
        %v2627 = vadd.f32 0.0, %v2626
        %v2628 = vpop.f32.mrb[0].mxu0
        %v2629 = vpop.f32.mrb[0].mxu0
        %v2630 = vadd.f32 0.0, %v2629
        %v2631 = vpop.f32.mrb[0].mxu0
        %2632 = vmatprep.mubr.bf16.mxu0 %v2245
        %2633 = vmatmul.mubr.bf16.gmra.mrb[0].mxu0 %v2244
        %v2634 = vpop.f32.mrb[0].mxu0
        %v2635 = vadd.f32 0.0, %v2634
        %v2636 = vpop.f32.mrb[0].mxu0
        %v2637 = vpop.f32.mrb[0].mxu0
        %v2638 = vadd.f32 0.0, %v2637
        %v2639 = vpop.f32.mrb[0].mxu0
        %2640 = vmatprep.mubr.bf16.mxu0 %v2249
        %2641 = vmatmul.mubr.bf16.gmra.mrb[0].mxu0 %v2248
        %v2642 = vpop.f32.mrb[0].mxu0
        %v2643 = vadd.f32 0.0, %v2642
        %v2644 = vpop.f32.mrb[0].mxu0
        %v2645 = vpop.f32.mrb[0].mxu0
        %v2646 = vadd.f32 0.0, %v2645
        %v2647 = vpop.f32.mrb[0].mxu0
        %2648 = vmatprep.mubr.bf16.mxu0 %v2253
        %2649 = vmatmul.mubr.bf16.gmra.mrb[0].mxu0 %v2252
        %v2650 = vpop.f32.mrb[0].mxu0
        %v2651 = vadd.f32 0.0, %v2650
        %v2652 = vpop.f32.mrb[0].mxu0
        %v2653 = vpop.f32.mrb[0].mxu0
        %v2654 = vadd.f32 0.0, %v2653
        %v2655 = vpop.f32.mrb[0].mxu0
        %2656 = vmatprep.mubr.bf16.mxu0 %v2257
        %2657 = vmatmul.mubr.bf16.gmra.mrb[0].mxu0 %v2256
        %v2658 = vpop.f32.mrb[0].mxu0
        %v2659 = vadd.f32 0.0, %v2658
        %v2660 = vpop.f32.mrb[0].mxu0
        %v2661 = vpop.f32.mrb[0].mxu0
        %v2662 = vadd.f32 0.0, %v2661
        %v2663 = vpop.f32.mrb[0].mxu0
        %2664 = vmatprep.mubr.bf16.mxu0 %v2261
        %2665 = vmatmul.mubr.bf16.gmra.mrb[0].mxu0 %v2260
        %v2666 = vpop.f32.mrb[0].mxu0
        %v2667 = vadd.f32 0.0, %v2666
        %v2668 = vpop.f32.mrb[0].mxu0
        %v2669 = vpop.f32.mrb[0].mxu0
        %v2670 = vadd.f32 0.0, %v2669
        %v2671 = vpop.f32.mrb[0].mxu0
        %2672 = vmatprep.mubr.bf16.mxu0 %v2265
        %2673 = vmatmul.mubr.bf16.gmra.mrb[0].mxu0 %v2264
        %v2674 = vpop.f32.mrb[0].mxu0
        %v2675 = vadd.f32 0.0, %v2674
        %v2676 = vpop.f32.mrb[0].mxu0
        %v2677 = vpop.f32.mrb[0].mxu0
        %v2678 = vadd.f32 0.0, %v2677
        %v2679 = vpop.f32.mrb[0].mxu0
        %2680 = vmatprep.mubr.bf16.mxu0 %v2269
        %2681 = vmatmul.mubr.bf16.gmra.mrb[0].mxu0 %v2268
        %v2682 = vpop.f32.mrb[0].mxu0
        %v2683 = vadd.f32 0.0, %v2682
        %v2684 = vpop.f32.mrb[0].mxu0
        %v2685 = vpop.f32.mrb[0].mxu0
        %v2686 = vadd.f32 0.0, %v2685
        %v2687 = vpop.f32.mrb[0].mxu0
        %2688 = vmatprep.mubr.bf16.mxu0 %v2273
        %2689 = vmatmul.mubr.bf16.gmra.mrb[0].mxu0 %v2272
        %v2690 = vpop.f32.mrb[0].mxu0
        %v2691 = vadd.f32 0.0, %v2690
        %v2692 = vpop.f32.mrb[0].mxu0
        %v2693 = vpop.f32.mrb[0].mxu0
        %v2694 = vadd.f32 0.0, %v2693
        %v2695 = vpop.f32.mrb[0].mxu0
        %2696 = vmatprep.mubr.bf16.mxu0 %v2277
        %2697 = vmatmul.mubr.bf16.gmra.mrb[0].mxu0 %v2276
        %v2698 = vpop.f32.mrb[0].mxu0
        %v2699 = vadd.f32 0.0, %v2698
        %v2700 = vpop.f32.mrb[0].mxu0
        %v2701 = vpop.f32.mrb[0].mxu0
        %v2702 = vadd.f32 0.0, %v2701
        %v2703 = vpop.f32.mrb[0].mxu0
        %2704 = vmatprep.mubr.bf16.mxu0 %v2281
        %2705 = vmatmul.mubr.bf16.gmra.mrb[0].mxu0 %v2280
        %v2706 = vpop.f32.mrb[0].mxu0
        %v2707 = vadd.f32 0.0, %v2706
        %v2708 = vpop.f32.mrb[0].mxu0
        %v2709 = vpop.f32.mrb[0].mxu0
        %v2710 = vadd.f32 0.0, %v2709
        %v2711 = vpop.f32.mrb[0].mxu0
        %2712 = vmatprep.mubr.bf16.mxu0 %v2285
        %2713 = vmatmul.mubr.bf16.gmra.mrb[0].mxu0 %v2284
        %v2714 = vpop.f32.mrb[0].mxu0
        %v2715 = vadd.f32 0.0, %v2714
        %v2716 = vpop.f32.mrb[0].mxu0
        %v2717 = vpop.f32.mrb[0].mxu0
        %v2718 = vadd.f32 0.0, %v2717
        %v2719 = vpop.f32.mrb[0].mxu0
        %2720 = vmatprep.mubr.bf16.mxu0 %v2289
        %2721 = vmatmul.mubr.bf16.gmra.mrb[0].mxu0 %v2288
        %v2722 = vpop.f32.mrb[0].mxu0
        %v2723 = vadd.f32 0.0, %v2722
        %v2724 = vpop.f32.mrb[0].mxu0
        %v2725 = vpop.f32.mrb[0].mxu0
        %v2726 = vadd.f32 0.0, %v2725
        %v2727 = vpop.f32.mrb[0].mxu0
        %2728 = vmatprep.mubr.bf16.mxu0 %v2293
        %2729 = vmatmul.mubr.bf16.gmra.mrb[0].mxu0 %v2292
        %v2730 = vpop.f32.mrb[0].mxu0
        %v2731 = vadd.f32 0.0, %v2730
        %v2732 = vpop.f32.mrb[0].mxu0
        %v2733 = vpop.f32.mrb[0].mxu0
        %v2734 = vadd.f32 0.0, %v2733
        %v2735 = vpop.f32.mrb[0].mxu0
        %2736 = vmatprep.mubr.bf16.mxu0 %v2297
        %2737 = vmatmul.mubr.bf16.gmra.mrb[0].mxu0 %v2296
        %v2738 = vpop.f32.mrb[0].mxu0
        %v2739 = vadd.f32 0.0, %v2738
        %v2740 = vpop.f32.mrb[0].mxu0
        %v2741 = vpop.f32.mrb[0].mxu0
        %v2742 = vadd.f32 0.0, %v2741
        %v2743 = vpop.f32.mrb[0].mxu0
        %2744 = vmatprep.mubr.bf16.mxu0 %v2301
        %2745 = vmatmul.mubr.bf16.gmra.mrb[0].mxu0 %v2300
        %v2746 = vpop.f32.mrb[0].mxu0
        %v2747 = vadd.f32 0.0, %v2746
        %v2748 = vpop.f32.mrb[0].mxu0
        %v2749 = vpop.f32.mrb[0].mxu0
        %v2750 = vadd.f32 0.0, %v2749
        %v2751 = vpop.f32.mrb[0].mxu0
        %2752 = vdwg.mxu0
        %2753 = vmatprep.subr.bf16.mxu0 0
        %2754 = vmatpush1.bf16.msra.mxu0 %v2544
        %2755 = vmatprep.subr.bf16.mxu0 0
        %2756 = vmatpush1.bf16.msra.mxu0 %v2545
        %2757 = vmatprep.subr.bf16.mxu0 0
        %2758 = vmatpush1.bf16.msra.mxu0 %v2546
        %2759 = vmatprep.subr.bf16.mxu0 0
        %2760 = vmatpush1.bf16.msra.mxu0 %v2547
        %2761 = vmatprep.subr.bf16.mxu0 0
        %2762 = vmatpush1.bf16.msra.mxu0 %v2548
        %2763 = vmatprep.subr.bf16.mxu0 0
        %2764 = vmatpush1.bf16.msra.mxu0 %v2549
        %2765 = vmatprep.subr.bf16.mxu0 0
        %2766 = vmatpush1.bf16.msra.mxu0 %v2550
        %2767 = vmatprep.subr.bf16.mxu0 0
        %2768 = vmatpush1.bf16.msra.mxu0 %v2551
        %2769 = vmatprep.subr.bf16.mxu0 0
        %2770 = vmatpush1.bf16.msra.mxu0 %v2552
        %2771 = vmatprep.subr.bf16.mxu0 0
        %2772 = vmatpush1.bf16.msra.mxu0 %v2553
        %2773 = vmatprep.subr.bf16.mxu0 0
        %2774 = vmatpush1.bf16.msra.mxu0 %v2554
        %2775 = vmatprep.subr.bf16.mxu0 0
        %2776 = vmatpush1.bf16.msra.mxu0 %v2555
        %2777 = vmatprep.subr.bf16.mxu0 0
        %2778 = vmatpush1.bf16.msra.mxu0 %v2556
        %2779 = vmatprep.subr.bf16.mxu0 0
        %2780 = vmatpush1.bf16.msra.mxu0 %v2557
        %2781 = vmatprep.subr.bf16.mxu0 0
        %2782 = vmatpush1.bf16.msra.mxu0 %v2558
        %2783 = vmatprep.subr.bf16.mxu0 0
        %2784 = vmatpush1.bf16.msra.mxu0 %v2559
        %2785 = vmatprep.mubr.bf16.mxu0 %v2243
        %2786 = vmatmul.mubr.bf16.gmra.mrb[0].mxu0 %v2242
        %v2787 = vpop.f32.mrb[0].mxu0
        %v2788 = vadd.f32 %v2627, %v2787
        %v2789 = vpop.f32.mrb[0].mxu0
        %v2790 = vpop.f32.mrb[0].mxu0
        %v2791 = vadd.f32 %v2630, %v2790
        %v2792 = vpop.f32.mrb[0].mxu0
        %2793 = vmatprep.mubr.bf16.mxu0 %v2247
        %2794 = vmatmul.mubr.bf16.gmra.mrb[0].mxu0 %v2246
        %v2795 = vpop.f32.mrb[0].mxu0
        %v2796 = vadd.f32 %v2635, %v2795
        %v2797 = vpop.f32.mrb[0].mxu0
        %v2798 = vpop.f32.mrb[0].mxu0
        %v2799 = vadd.f32 %v2638, %v2798
        %v2800 = vpop.f32.mrb[0].mxu0
        %2801 = vmatprep.mubr.bf16.mxu0 %v2251
        %2802 = vmatmul.mubr.bf16.gmra.mrb[0].mxu0 %v2250
        %v2803 = vpop.f32.mrb[0].mxu0
        %v2804 = vadd.f32 %v2643, %v2803
        %v2805 = vpop.f32.mrb[0].mxu0
        %v2806 = vpop.f32.mrb[0].mxu0
        %v2807 = vadd.f32 %v2646, %v2806
        %v2808 = vpop.f32.mrb[0].mxu0
        %2809 = vmatprep.mubr.bf16.mxu0 %v2255
        %2810 = vmatmul.mubr.bf16.gmra.mrb[0].mxu0 %v2254
        %v2811 = vpop.f32.mrb[0].mxu0
        %v2812 = vadd.f32 %v2651, %v2811
        %v2813 = vpop.f32.mrb[0].mxu0
        %v2814 = vpop.f32.mrb[0].mxu0
        %v2815 = vadd.f32 %v2654, %v2814
        %v2816 = vpop.f32.mrb[0].mxu0
        %2817 = vmatprep.mubr.bf16.mxu0 %v2259
        %2818 = vmatmul.mubr.bf16.gmra.mrb[0].mxu0 %v2258
        %v2819 = vpop.f32.mrb[0].mxu0
        %v2820 = vadd.f32 %v2659, %v2819
        %v2821 = vpop.f32.mrb[0].mxu0
        %v2822 = vpop.f32.mrb[0].mxu0
        %v2823 = vadd.f32 %v2662, %v2822
        %v2824 = vpop.f32.mrb[0].mxu0
        %2825 = vmatprep.mubr.bf16.mxu0 %v2263
        %2826 = vmatmul.mubr.bf16.gmra.mrb[0].mxu0 %v2262
        %v2827 = vpop.f32.mrb[0].mxu0
        %v2828 = vadd.f32 %v2667, %v2827
        %v2829 = vpop.f32.mrb[0].mxu0
        %v2830 = vpop.f32.mrb[0].mxu0
        %v2831 = vadd.f32 %v2670, %v2830
        %v2832 = vpop.f32.mrb[0].mxu0
        %2833 = vmatprep.mubr.bf16.mxu0 %v2267
        %2834 = vmatmul.mubr.bf16.gmra.mrb[0].mxu0 %v2266
        %v2835 = vpop.f32.mrb[0].mxu0
        %v2836 = vadd.f32 %v2675, %v2835
        %v2837 = vpop.f32.mrb[0].mxu0
        %v2838 = vpop.f32.mrb[0].mxu0
        %v2839 = vadd.f32 %v2678, %v2838
        %v2840 = vpop.f32.mrb[0].mxu0
        %2841 = vmatprep.mubr.bf16.mxu0 %v2271
        %2842 = vmatmul.mubr.bf16.gmra.mrb[0].mxu0 %v2270
        %v2843 = vpop.f32.mrb[0].mxu0
        %v2844 = vadd.f32 %v2683, %v2843
        %v2845 = vpop.f32.mrb[0].mxu0
        %v2846 = vpop.f32.mrb[0].mxu0
        %v2847 = vadd.f32 %v2686, %v2846
        %v2848 = vpop.f32.mrb[0].mxu0
        %2849 = vmatprep.mubr.bf16.mxu0 %v2275
        %2850 = vmatmul.mubr.bf16.gmra.mrb[0].mxu0 %v2274
        %v2851 = vpop.f32.mrb[0].mxu0
        %v2852 = vadd.f32 %v2691, %v2851
        %v2853 = vpop.f32.mrb[0].mxu0
        %v2854 = vpop.f32.mrb[0].mxu0
        %v2855 = vadd.f32 %v2694, %v2854
        %v2856 = vpop.f32.mrb[0].mxu0
        %2857 = vmatprep.mubr.bf16.mxu0 %v2279
        %2858 = vmatmul.mubr.bf16.gmra.mrb[0].mxu0 %v2278
        %v2859 = vpop.f32.mrb[0].mxu0
        %v2860 = vadd.f32 %v2699, %v2859
        %v2861 = vpop.f32.mrb[0].mxu0
        %v2862 = vpop.f32.mrb[0].mxu0
        %v2863 = vadd.f32 %v2702, %v2862
        %v2864 = vpop.f32.mrb[0].mxu0
        %2865 = vmatprep.mubr.bf16.mxu0 %v2283
        %2866 = vmatmul.mubr.bf16.gmra.mrb[0].mxu0 %v2282
        %v2867 = vpop.f32.mrb[0].mxu0
        %v2868 = vadd.f32 %v2707, %v2867
        %v2869 = vpop.f32.mrb[0].mxu0
        %v2870 = vpop.f32.mrb[0].mxu0
        %v2871 = vadd.f32 %v2710, %v2870
        %v2872 = vpop.f32.mrb[0].mxu0
        %2873 = vmatprep.mubr.bf16.mxu0 %v2287
        %2874 = vmatmul.mubr.bf16.gmra.mrb[0].mxu0 %v2286
        %v2875 = vpop.f32.mrb[0].mxu0
        %v2876 = vadd.f32 %v2715, %v2875
        %v2877 = vpop.f32.mrb[0].mxu0
        %v2878 = vpop.f32.mrb[0].mxu0
        %v2879 = vadd.f32 %v2718, %v2878
        %v2880 = vpop.f32.mrb[0].mxu0
        %2881 = vmatprep.mubr.bf16.mxu0 %v2291
        %2882 = vmatmul.mubr.bf16.gmra.mrb[0].mxu0 %v2290
        %v2883 = vpop.f32.mrb[0].mxu0
        %v2884 = vadd.f32 %v2723, %v2883
        %v2885 = vpop.f32.mrb[0].mxu0
        %v2886 = vpop.f32.mrb[0].mxu0
        %v2887 = vadd.f32 %v2726, %v2886
        %v2888 = vpop.f32.mrb[0].mxu0
        %2889 = vmatprep.mubr.bf16.mxu0 %v2295
        %2890 = vmatmul.mubr.bf16.gmra.mrb[0].mxu0 %v2294
        %v2891 = vpop.f32.mrb[0].mxu0
        %v2892 = vadd.f32 %v2731, %v2891
        %v2893 = vpop.f32.mrb[0].mxu0
        %v2894 = vpop.f32.mrb[0].mxu0
        %v2895 = vadd.f32 %v2734, %v2894
        %v2896 = vpop.f32.mrb[0].mxu0
        %2897 = vmatprep.mubr.bf16.mxu0 %v2299
        %2898 = vmatmul.mubr.bf16.gmra.mrb[0].mxu0 %v2298
        %v2899 = vpop.f32.mrb[0].mxu0
        %v2900 = vadd.f32 %v2739, %v2899
        %v2901 = vpop.f32.mrb[0].mxu0
        %v2902 = vpop.f32.mrb[0].mxu0
        %v2903 = vadd.f32 %v2742, %v2902
        %v2904 = vpop.f32.mrb[0].mxu0
        %2905 = vmatprep.mubr.bf16.mxu0 %v2303
        %2906 = vmatmul.mubr.bf16.gmra.mrb[0].mxu0 %v2302
        %v2907 = vpop.f32.mrb[0].mxu0
        %v2908 = vadd.f32 %v2747, %v2907
        %v2909 = vpop.f32.mrb[0].mxu0
        %v2910 = vpop.f32.mrb[0].mxu0
        %v2911 = vadd.f32 %v2750, %v2910
        %v2912 = vpop.f32.mrb[0].mxu0
        %2913 = vdwg.mxu0
        %v2914 = vadd.f32 %v2304, %v2788
        %v2915 = vadd.f32 %v2305, %v2791
        %v2916 = vadd.f32 %v2306, %v2796
        %v2917 = vadd.f32 %v2307, %v2799
        %v2918 = vadd.f32 %v2308, %v2804
        %v2919 = vadd.f32 %v2309, %v2807
        %v2920 = vadd.f32 %v2310, %v2812
        %v2921 = vadd.f32 %v2311, %v2815
        %v2922 = vadd.f32 %v2312, %v2820
        %v2923 = vadd.f32 %v2313, %v2823
        %v2924 = vadd.f32 %v2314, %v2828
        %v2925 = vadd.f32 %v2315, %v2831
        %v2926 = vadd.f32 %v2316, %v2836
        %v2927 = vadd.f32 %v2317, %v2839
        %v2928 = vadd.f32 %v2318, %v2844
        %v2929 = vadd.f32 %v2319, %v2847
        %v2930 = vadd.f32 %v2320, %v2852
        %v2931 = vadd.f32 %v2321, %v2855
        %v2932 = vadd.f32 %v2322, %v2860
        %v2933 = vadd.f32 %v2323, %v2863
        %v2934 = vadd.f32 %v2324, %v2868
        %v2935 = vadd.f32 %v2325, %v2871
        %v2936 = vadd.f32 %v2326, %v2876
        %v2937 = vadd.f32 %v2327, %v2879
        %v2938 = vadd.f32 %v2328, %v2884
        %v2939 = vadd.f32 %v2329, %v2887
        %v2940 = vadd.f32 %v2330, %v2892
        %v2941 = vadd.f32 %v2331, %v2895
        %v2942 = vadd.f32 %v2332, %v2900
        %v2943 = vadd.f32 %v2333, %v2903
        %v2944 = vadd.f32 %v2334, %v2908
        %v2945 = vadd.f32 %v2335, %v2911
        %2946 = vst [vmem:[#allocation2] sm:$0xff] %v2914
        %2947 = vst [vmem:[#allocation2 + $0x8] sm:$0xff] %v2915
        %2948 = vst [vmem:[#allocation2 + $0x10] sm:$0xff] %v2916
        %2949 = vst [vmem:[#allocation2 + $0x18] sm:$0xff] %v2917
        %2950 = vst [vmem:[#allocation2 + $0x20] sm:$0xff] %v2918
        %2951 = vst [vmem:[#allocation2 + $0x28] sm:$0xff] %v2919
        %2952 = vst [vmem:[#allocation2 + $0x30] sm:$0xff] %v2920
        %2953 = vst [vmem:[#allocation2 + $0x38] sm:$0xff] %v2921
        %2954 = vst [vmem:[#allocation2 + $0x40] sm:$0xff] %v2922
        %2955 = vst [vmem:[#allocation2 + $0x48] sm:$0xff] %v2923
        %2956 = vst [vmem:[#allocation2 + $0x50] sm:$0xff] %v2924
        %2957 = vst [vmem:[#allocation2 + $0x58] sm:$0xff] %v2925
        %2958 = vst [vmem:[#allocation2 + $0x60] sm:$0xff] %v2926
        %2959 = vst [vmem:[#allocation2 + $0x68] sm:$0xff] %v2927
        %2960 = vst [vmem:[#allocation2 + $0x70] sm:$0xff] %v2928
        %2961 = vst [vmem:[#allocation2 + $0x78] sm:$0xff] %v2929
        %2962 = vst [vmem:[#allocation2 + $0x80] sm:$0xff] %v2930
        %2963 = vst [vmem:[#allocation2 + $0x88] sm:$0xff] %v2931
        %2964 = vst [vmem:[#allocation2 + $0x90] sm:$0xff] %v2932
        %2965 = vst [vmem:[#allocation2 + $0x98] sm:$0xff] %v2933
        %2966 = vst [vmem:[#allocation2 + $0xa0] sm:$0xff] %v2934
        %2967 = vst [vmem:[#allocation2 + $0xa8] sm:$0xff] %v2935
        %2968 = vst [vmem:[#allocation2 + $0xb0] sm:$0xff] %v2936
        %2969 = vst [vmem:[#allocation2 + $0xb8] sm:$0xff] %v2937
        %2970 = vst [vmem:[#allocation2 + $0xc0] sm:$0xff] %v2938
        %2971 = vst [vmem:[#allocation2 + $0xc8] sm:$0xff] %v2939
        %2972 = vst [vmem:[#allocation2 + $0xd0] sm:$0xff] %v2940
        %2973 = vst [vmem:[#allocation2 + $0xd8] sm:$0xff] %v2941
        %2974 = vst [vmem:[#allocation2 + $0xe0] sm:$0xff] %v2942
        %2975 = vst [vmem:[#allocation2 + $0xe8] sm:$0xff] %v2943
        %2976 = vst [vmem:[#allocation2 + $0xf0] sm:$0xff] %v2944
        %2977 = vst [vmem:[#allocation2 + $0xf8] sm:$0xff] %v2945
        // Predicated region
        $region57: #{tpu_custom_call.1} parent=39 // pred_check
          %p2978 = pneg %p324
        $region58: #{tpu_custom_call.1} parent=39 // pred_check_branch
          %2980 = sbr.rel (%p2978) target = $region60
        $region59: #{tpu_custom_call.1} parent=39 // pred_region
          %v2981 = vld [vmem:[#allocation2] sm:$0xff]
          %v2982 = vld [vmem:[#allocation2 + $0x8] sm:$0xff]
          %v2983 = vld [vmem:[#allocation2 + $0x10] sm:$0xff]
          %v2984 = vld [vmem:[#allocation2 + $0x18] sm:$0xff]
          %v2985 = vld [vmem:[#allocation2 + $0x20] sm:$0xff]
          %v2986 = vld [vmem:[#allocation2 + $0x28] sm:$0xff]
          %v2987 = vld [vmem:[#allocation2 + $0x30] sm:$0xff]
          %v2988 = vld [vmem:[#allocation2 + $0x38] sm:$0xff]
          %v2989 = vld [vmem:[#allocation2 + $0x40] sm:$0xff]
          %v2990 = vld [vmem:[#allocation2 + $0x48] sm:$0xff]
          %v2991 = vld [vmem:[#allocation2 + $0x50] sm:$0xff]
          %v2992 = vld [vmem:[#allocation2 + $0x58] sm:$0xff]
          %v2993 = vld [vmem:[#allocation2 + $0x60] sm:$0xff]
          %v2994 = vld [vmem:[#allocation2 + $0x68] sm:$0xff]
          %v2995 = vld [vmem:[#allocation2 + $0x70] sm:$0xff]
          %v2996 = vld [vmem:[#allocation2 + $0x78] sm:$0xff]
          %v2997 = vld [vmem:[#allocation2 + $0x80] sm:$0xff]
          %v2998 = vld [vmem:[#allocation2 + $0x88] sm:$0xff]
          %v2999 = vld [vmem:[#allocation2 + $0x90] sm:$0xff]
          %v3000 = vld [vmem:[#allocation2 + $0x98] sm:$0xff]
          %v3001 = vld [vmem:[#allocation2 + $0xa0] sm:$0xff]
          %v3002 = vld [vmem:[#allocation2 + $0xa8] sm:$0xff]
          %v3003 = vld [vmem:[#allocation2 + $0xb0] sm:$0xff]
          %v3004 = vld [vmem:[#allocation2 + $0xb8] sm:$0xff]
          %v3005 = vld [vmem:[#allocation2 + $0xc0] sm:$0xff]
          %v3006 = vld [vmem:[#allocation2 + $0xc8] sm:$0xff]
          %v3007 = vld [vmem:[#allocation2 + $0xd0] sm:$0xff]
          %v3008 = vld [vmem:[#allocation2 + $0xd8] sm:$0xff]
          %v3009 = vld [vmem:[#allocation2 + $0xe0] sm:$0xff]
          %v3010 = vld [vmem:[#allocation2 + $0xe8] sm:$0xff]
          %v3011 = vld [vmem:[#allocation2 + $0xf0] sm:$0xff]
          %v3012 = vld [vmem:[#allocation2 + $0xf8] sm:$0xff]
          %v3013 = vld [vmem:[%s4] sm:$0x1]
          %v3015 = vlaneseq
          %v3016 = vshrl.u32 %v3015, 7
          %v3017 = vsub.s32 0, %v3016
          %v3018 = vrot.slane %v3013, %v3017
          %v3020 = vadd.f32 %v2981, %v3018
          %v3021 = vadd.f32 %v2982, %v3018
          %v3022 = vadd.f32 %v2983, %v3018
          %v3023 = vadd.f32 %v2984, %v3018
          %v3024 = vadd.f32 %v2985, %v3018
          %v3025 = vadd.f32 %v2986, %v3018
          %v3026 = vadd.f32 %v2987, %v3018
          %v3027 = vadd.f32 %v2988, %v3018
          %v3028 = vadd.f32 %v2989, %v3018
          %v3029 = vadd.f32 %v2990, %v3018
          %v3030 = vadd.f32 %v2991, %v3018
          %v3031 = vadd.f32 %v2992, %v3018
          %v3032 = vadd.f32 %v2993, %v3018
          %v3033 = vadd.f32 %v2994, %v3018
          %v3034 = vadd.f32 %v2995, %v3018
          %v3035 = vadd.f32 %v2996, %v3018
          %v3036 = vadd.f32 %v2997, %v3018
          %v3037 = vadd.f32 %v2998, %v3018
          %v3038 = vadd.f32 %v2999, %v3018
          %v3039 = vadd.f32 %v3000, %v3018
          %v3040 = vadd.f32 %v3001, %v3018
          %v3041 = vadd.f32 %v3002, %v3018
          %v3042 = vadd.f32 %v3003, %v3018
          %v3043 = vadd.f32 %v3004, %v3018
          %v3044 = vadd.f32 %v3005, %v3018
          %v3045 = vadd.f32 %v3006, %v3018
          %v3046 = vadd.f32 %v3007, %v3018
          %v3047 = vadd.f32 %v3008, %v3018
          %v3048 = vadd.f32 %v3009, %v3018
          %v3049 = vadd.f32 %v3010, %v3018
          %v3050 = vadd.f32 %v3011, %v3018
          %v3051 = vadd.f32 %v3012, %v3018
          %3052 = vst [vmem:[%s313] sm:$0xff] %v3020
          %3053 = vst [vmem:[%s313 + $0x8] sm:$0xff] %v3021
          %3054 = vst [vmem:[%s313 + $0x10] sm:$0xff] %v3022
          %3055 = vst [vmem:[%s313 + $0x18] sm:$0xff] %v3023
          %3056 = vst [vmem:[%s313 + $0x20] sm:$0xff] %v3024
          %3057 = vst [vmem:[%s313 + $0x28] sm:$0xff] %v3025
          %3058 = vst [vmem:[%s313 + $0x30] sm:$0xff] %v3026
          %3059 = vst [vmem:[%s313 + $0x38] sm:$0xff] %v3027
          %3060 = vst [vmem:[%s313 + $0x40] sm:$0xff] %v3028
          %3061 = vst [vmem:[%s313 + $0x48] sm:$0xff] %v3029
          %3062 = vst [vmem:[%s313 + $0x50] sm:$0xff] %v3030
          %3063 = vst [vmem:[%s313 + $0x58] sm:$0xff] %v3031
          %3064 = vst [vmem:[%s313 + $0x60] sm:$0xff] %v3032
          %3065 = vst [vmem:[%s313 + $0x68] sm:$0xff] %v3033
          %3066 = vst [vmem:[%s313 + $0x70] sm:$0xff] %v3034
          %3067 = vst [vmem:[%s313 + $0x78] sm:$0xff] %v3035
          %3068 = vst [vmem:[%s313 + $0x80] sm:$0xff] %v3036
          %3069 = vst [vmem:[%s313 + $0x88] sm:$0xff] %v3037
          %3070 = vst [vmem:[%s313 + $0x90] sm:$0xff] %v3038
          %3071 = vst [vmem:[%s313 + $0x98] sm:$0xff] %v3039
          %3072 = vst [vmem:[%s313 + $0xa0] sm:$0xff] %v3040
          %3073 = vst [vmem:[%s313 + $0xa8] sm:$0xff] %v3041
          %3074 = vst [vmem:[%s313 + $0xb0] sm:$0xff] %v3042
          %3075 = vst [vmem:[%s313 + $0xb8] sm:$0xff] %v3043
          %3076 = vst [vmem:[%s313 + $0xc0] sm:$0xff] %v3044
          %3077 = vst [vmem:[%s313 + $0xc8] sm:$0xff] %v3045
          %3078 = vst [vmem:[%s313 + $0xd0] sm:$0xff] %v3046
          %3079 = vst [vmem:[%s313 + $0xd8] sm:$0xff] %v3047
          %3080 = vst [vmem:[%s313 + $0xe0] sm:$0xff] %v3048
          %3081 = vst [vmem:[%s313 + $0xe8] sm:$0xff] %v3049
          %3082 = vst [vmem:[%s313 + $0xf0] sm:$0xff] %v3050
          %3083 = vst [vmem:[%s313 + $0xf8] sm:$0xff] %v3051
        $region60: #{tpu_custom_call.1} parent=39 // pred_fallthru
          _
        %s3084 = sand.u32 %s168, 1
        %s3085 = scalar_lea.sflag [#allocation5], %s3084
        %s3086 = sand.u32 %s168, 1
        %s3087 = smul.addr %s3086, 256
        %s3088 = scalar_lea.vmem [#allocation9], %s3087
        // Predicated region
        $region61: #{tpu_custom_call.1} parent=39 // pred_check
          %p3089 = pneg %p178
        $region62: #{tpu_custom_call.1} parent=39 // pred_check_branch
          %3091 = sbr.rel (%p3089) target = $region64
        $region63: #{tpu_custom_call.1} parent=39 // pred_region
          %s3092 = smul.u32 32, %s27
          %s3094 = ssub.s32 4096, 4096
          %3095 = vsyncadd %s3085, %s3094
          %s3096 = smul.addr %s3092, 128
          %s3097 = scalar_lea.hbm %s5, %s3096
          %s3098 = sshll.u32 %s3088, 4
          %s3099 = int_to_ptr.vmem [resolvable:$true] %s3098
          %3104 = dma.vmem_to_hbm [thread:$0]  %s3099, 4096, %s3097, %s3085, 128, 128, 8
        $region64: #{tpu_custom_call.1} parent=39 // pred_fallthru
          _
      $region40: #{tpu_custom_call.1} parent=5 // pred_fallthru
        _
      %p3105 = scmp.le.s32.totalorder 2, %s18
      // Predicated region
      $region65: #{tpu_custom_call.1} parent=5 // pred_check
        %p3106 = pneg %p3105
      $region66: #{tpu_custom_call.1} parent=5 // pred_check_branch
        %3108 = sbr.rel (%p3106) target = $region68
      $region67: #{tpu_custom_call.1} parent=5 // pred_region
        %s3109 = ssub.s32 %s18, 2
        // Predicated region
        $region69: #{tpu_custom_call.1} parent=67 // pred_check
          %p3110 = pneg %p184
        $region70: #{tpu_custom_call.1} parent=67 // pred_check_branch
          %3112 = sbr.rel (%p3110) target = $region72
        $region71: #{tpu_custom_call.1} parent=67 // pred_region
          %s3113 = sand.u32 %s169, 1
          %s3114 = scalar_lea.sflag [#allocation5], %s3113
          %s3115 = sand.u32 %s169, 1
          %s3116 = smul.addr %s3115, 256
          %s3117 = scalar_lea.vmem [#allocation9], %s3116
          %3118 = dma.done %s3114, 4096
        $region72: #{tpu_custom_call.1} parent=67 // pred_fallthru
          _
      $region68: #{tpu_custom_call.1} parent=5 // pred_fallthru
        _
    $region6: #{tpu_custom_call.1} parent=1 // loop_footer
      %s22 = sadd.s32 1, %s18
    $region7: #{tpu_custom_call.1} parent=1 // loop_footer_branch
      %17 = sbr.rel target = $region3
    $region8: #{tpu_custom_call.1} parent=1 // loop_exit
      _
    %3119 = vsyncpa [#allocation4], 1
    %s3120 = scalar_lea.sflag [#allocation4], 1
    %3121 = vsyncpa %s3120, 1
    %3122 = vsyncpa [#allocation7], 1
    %3123 = vsyncpa [#allocation5], 1
    %s3124 = scalar_lea.sflag [#allocation5], 1
    %3125 = vsyncpa %s3124, 1

</llo_original>
